<compile_context>
chip_gen: v6e
topology: v6e:2x2x1
jax: 0.10.0
libtpu: 0.0.40
codegen_flags: <defaults>
</compile_context>

<pallas_src>
import jax
import jax.numpy as jnp
from jax import lax
from jax.experimental import pallas as pl
from jax.experimental.pallas import tpu as pltpu

LANE = 128          # lane-dense padded width for the fc stack
C1_PAD = 8          # conv1 output channels padded 6 -> 8
C2_PAD = 16         # conv2 output channels: exactly the 16 valid channels


def _row_block(r, max_rows):
    """Row tile: a divisor of r, multiple of 8 (or r itself), <= max_rows,
    preferring >= 2 grid steps so v7x's two TensorCores both get work."""
    if r <= 8 or r % 8 != 0:
        return r  # full block (block second-minor dim must be 8-aligned or full)
    cap = min(max_rows, r)
    divs = [d for d in range(8, cap + 1, 8) if r % d == 0]
    if not divs:
        return r
    multi = [d for d in divs if d <= r // 2]
    return max(multi) if multi else max(divs)


# ----------------------------- Pallas kernels -----------------------------

def _conv_relu_pool_kernel(p_ref, w_ref, b_ref, o_ref):
    """Fused conv (im2col matmul) + 2x2 maxpool + bias + ReLU.

    p_ref: (4, tr, K)  quadrant-ordered im2col patches (quadrant = pool tap (di, dj))
    w_ref: (K, O)      reordered conv weight, output channels zero-padded
    b_ref: (1, O)
    o_ref: (tr, O)     pooled output rows in (n, hp, wp) order

    relu(max_q(dot_q) + b) == pool(relu(conv + b)): ReLU is monotone, bias is
    quadrant-invariant, so bias/ReLU are applied once after the quadrant max.
    """
    nq, tr, kdim = p_ref.shape
    o = o_ref.shape[-1]
    w = w_ref[...]
    if tr % 8 == 0:
        # Single weight push to the MXU: one (4*tr, K) x (K, O) matmul.
        acc = jnp.dot(p_ref[...].reshape(nq * tr, kdim), w,
                      preferred_element_type=jnp.float32)
        pooled = acc.reshape(nq, tr, o).max(axis=0)
    else:
        # Ragged row tile (tr not sublane-aligned): per-quadrant dots, max on raw dots.
        pooled = jnp.dot(p_ref[0], w, preferred_element_type=jnp.float32)
        for q in range(1, nq):
            pooled = jnp.maximum(
                pooled, jnp.dot(p_ref[q], w, preferred_element_type=jnp.float32))
    o_ref[...] = jnp.maximum(pooled + b_ref[...], 0.0).astype(o_ref.dtype)


def _fc_kernel(x_ref, w1_ref, b1_ref, w2_ref, b2_ref, w3_ref, b3_ref, o_ref):
    """Fused fc1 -> ReLU -> fc2 -> ReLU -> fc3. All fc widths lane-padded to 128."""
    h = jnp.dot(x_ref[...], w1_ref[...], preferred_element_type=jnp.float32) + b1_ref[...]
    h = jnp.maximum(h, 0.0)
    h = jnp.dot(h, w2_ref[...], preferred_element_type=jnp.float32) + b2_ref[...]
    h = jnp.maximum(h, 0.0)
    o_ref[...] = (jnp.dot(h, w3_ref[...], preferred_element_type=jnp.float32)
                  + b3_ref[...]).astype(o_ref.dtype)


# ----------------------------- wrappers -----------------------------

def conv_relu_pool(x, w_mat, bias, *, kh=5, kw=5):
    """x: (N, H, W, C) NHWC. Returns pooled activation (N, Hp, Wp, O_pad)."""
    n, h, w, c = x.shape
    ho, wo = h - kh + 1, w - kw + 1
    hp, wp = ho // 2, wo // 2                      # assumes even conv output (32x32 LeNet)
    k = kh * kw * c
    k_pad, o_pad = w_mat.shape
    r = n * hp * wp

    # TODO(synk): the im2col gather + quadrant transpose stays as XLA glue; stride-1
    # window slicing has no safe single-op in-kernel equivalent.
    taps = [x[:, ki:ki + ho, kj:kj + wo, :] for ki in range(kh) for kj in range(kw)]
    patches = jnp.concatenate(taps, axis=-1)                        # (N, ho, wo, K)
    if k_pad > k:
        patches = jnp.pad(patches, ((0, 0), (0, 0), (0, 0), (0, k_pad - k)))
    # Fold the 2x2 pool into a leading quadrant axis: rows ordered (n, hp, wp).
    patches = patches.reshape(n, hp, 2, wp, 2, k_pad)
    patches = jnp.transpose(patches, (2, 4, 0, 1, 3, 5)).reshape(4, r, k_pad)

    tr = _row_block(r, 1024)
    grid = (r // tr,)
    out = pl.pallas_call(
        _conv_relu_pool_kernel,
        out_shape=jax.ShapeDtypeStruct((r, o_pad), jnp.float32),
        grid_spec=pltpu.PrefetchScalarGridSpec(
            num_scalar_prefetch=0,
            grid=grid,
            in_specs=[
                pl.BlockSpec((4, tr, k_pad), lambda i: (0, i, 0)),
                pl.BlockSpec((k_pad, o_pad), lambda i: (0, 0)),
                pl.BlockSpec((1, o_pad), lambda i: (0, 0)),
            ],
            out_specs=pl.BlockSpec((tr, o_pad), lambda i: (i, 0)),
        ),
        compiler_params=pltpu.CompilerParams(dimension_semantics=("parallel",)),
    )(patches, w_mat, bias)
    return out.reshape(n, hp, wp, o_pad)


def fc_stack(x, w1, b1, w2, b2, w3, b3):
    """x: (N, 400) -> (N, 128) (first 10 columns are the logits)."""
    nb, kdim = x.shape
    o_pad = w3.shape[1]
    tb = _row_block(nb, 512)
    grid = (nb // tb,)
    return pl.pallas_call(
        _fc_kernel,
        out_shape=jax.ShapeDtypeStruct((nb, o_pad), jnp.float32),
        grid_spec=pltpu.PrefetchScalarGridSpec(
            num_scalar_prefetch=0,
            grid=grid,
            in_specs=[
                pl.BlockSpec((tb, kdim), lambda i: (i, 0)),
                pl.BlockSpec(w1.shape, lambda i: (0, 0)),
                pl.BlockSpec(b1.shape, lambda i: (0, 0)),
                pl.BlockSpec(w2.shape, lambda i: (0, 0)),
                pl.BlockSpec(b2.shape, lambda i: (0, 0)),
                pl.BlockSpec(w3.shape, lambda i: (0, 0)),
                pl.BlockSpec(b3.shape, lambda i: (0, 0)),
            ],
            out_specs=pl.BlockSpec((tb, o_pad), lambda i: (i, 0)),
        ),
        compiler_params=pltpu.CompilerParams(dimension_semantics=("parallel",)),
    )(x, w1, b1, w2, b2, w3, b3)


# ----------------------------- params -----------------------------

def init_params(key):
    """Deterministic init mimicking PyTorch's default U(-1/sqrt(fan_in), 1/sqrt(fan_in)).
    Layouts match the nn.Module (OIHW conv weights, (out, in) fc weights)."""
    def uniform(k, shape, fan_in):
        bound = 1.0 / jnp.sqrt(jnp.float32(fan_in))
        return jax.random.uniform(k, shape, jnp.float32, -bound, bound)

    ks = jax.random.split(key, 10)
    return {
        "conv1_w": uniform(ks[0], (6, 3, 5, 5), 3 * 5 * 5),
        "conv1_b": uniform(ks[1], (6,), 3 * 5 * 5),
        "conv2_w": uniform(ks[2], (16, 6, 5, 5), 6 * 5 * 5),
        "conv2_b": uniform(ks[3], (16,), 6 * 5 * 5),
        "fc1_w": uniform(ks[4], (120, 16 * 5 * 5), 16 * 5 * 5),
        "fc1_b": uniform(ks[5], (120,), 16 * 5 * 5),
        "fc2_w": uniform(ks[6], (84, 120), 120),
        "fc2_b": uniform(ks[7], (84,), 120),
        "fc3_w": uniform(ks[8], (10, 84), 84),
        "fc3_b": uniform(ks[9], (10,), 84),
    }


def prepare_params(p):
    """One-time (outside jit) repack of torch-layout weights into kernel layout:
    - conv weights -> (K_pad, O_pad) with K ordered (ki, kj, c) to match the im2col taps;
      conv1 output channels padded 6->8, conv2 input channels padded 6->8 (to match the
      8-channel padded conv1 activation) and output channels kept at the real 16.
    - fc weights -> (K, 128) pre-transposed + zero-padded; fc1's rows are permuted so the
      contiguous NHWC (N,5,5,16) flatten matches torch's channel-major view(-1, 400).
    """
    kh = kw = 5

    def conv_pack(w_oihw, b, c_in_pad, o_pad, k_pad=None):
        o, c = w_oihw.shape[0], w_oihw.shape[1]
        wp = jnp.pad(w_oihw, ((0, 0), (0, c_in_pad - c), (0, 0), (0, 0)))
        wm = jnp.transpose(wp, (2, 3, 1, 0)).reshape(kh * kw * c_in_pad, o)  # (K, O)
        if k_pad is not None and k_pad > wm.shape[0]:
            wm = jnp.pad(wm, ((0, k_pad - wm.shape[0]), (0, 0)))
        wm = jnp.pad(wm, ((0, 0), (0, o_pad - o)))
        bb = jnp.pad(b, (0, o_pad - o)).reshape(1, o_pad)
        return wm.astype(jnp.float32), bb.astype(jnp.float32)

    # conv1: K = 5*5*3 = 75 -> pad rows to 80 (matches end-padded patch K); O 6 -> 8.
    c1_w, c1_b = conv_pack(p["conv1_w"], p["conv1_b"], c_in_pad=3, o_pad=C1_PAD, k_pad=80)
    # conv2: in-channels padded 6 -> 8 (zero rows interleaved, matching the 8-channel
    # padded conv1 activation taps); K = 25*8 = 200 (already a multiple of 8); O = 16.
    c2_w, c2_b = conv_pack(p["conv2_w"], p["conv2_b"], c_in_pad=C1_PAD, o_pad=C2_PAD)

    # fc1: fold flatten permutation (torch index c*25 + h*5 + w vs ours (h*5+w)*16 + c).
    o1 = p["fc1_w"].shape[0]  # 120
    w1 = p["fc1_w"].reshape(o1, 16, 5, 5)              # (O, C, Hp, Wp)
    w1 = jnp.transpose(w1, (2, 3, 1, 0))               # (Hp, Wp, C, O)
    w1 = w1.reshape(5 * 5 * 16, o1)                    # (400, 120)
    w1 = jnp.pad(w1, ((0, 0), (0, LANE - o1)))         # (400, 128)
    b1 = jnp.pad(p["fc1_b"], (0, LANE - o1)).reshape(1, LANE)

    w2 = jnp.pad(p["fc2_w"].T, ((0, LANE - 120), (0, LANE - 84)))
    b2 = jnp.pad(p["fc2_b"], (0, LANE - 84)).reshape(1, LANE)
    w3 = jnp.pad(p["fc3_w"].T, ((0, LANE - 84), (0, LANE - 10)))
    b3 = jnp.pad(p["fc3_b"], (0, LANE - 10)).reshape(1, LANE)

    return {
        "c1_w": c1_w, "c1_b": c1_b,
        "c2_w": c2_w, "c2_b": c2_b,
        "fc1_w": w1.astype(jnp.float32), "fc1_b": b1.astype(jnp.float32),
        "fc2_w": w2.astype(jnp.float32), "fc2_b": b2.astype(jnp.float32),
        "fc3_w": w3.astype(jnp.float32), "fc3_b": b3.astype(jnp.float32),
    }


# ----------------------------- full forward -----------------------------

@jax.jit
def lenet_forward(x_nchw, kp):
    x = jnp.transpose(x_nchw, (0, 2, 3, 1)).astype(jnp.float32)   # (N, 32, 32, 3) NHWC
    x = conv_relu_pool(x, kp["c1_w"], kp["c1_b"])                 # (N, 14, 14, 8)
    x = conv_relu_pool(x, kp["c2_w"], kp["c2_b"])                 # (N, 5, 5, 16)
    n = x.shape[0]
    x = x.reshape(n, 5 * 5 * 16)   # contiguous flatten; perm folded into fc1 weight rows
    out = fc_stack(x, kp["fc1_w"], kp["fc1_b"], kp["fc2_w"], kp["fc2_b"],
                   kp["fc3_w"], kp["fc3_b"])                      # (N, 128)
    return out[:, :10]


# ----------------------------- pure-JAX reference (verification only) -----------------

def lenet_reference(x_nchw, p):
    hi = lax.Precision.HIGHEST

    def conv(x, w, b):
        y = lax.conv_general_dilated(x, w, (1, 1), "VALID",
                                     dimension_numbers=("NCHW", "OIHW", "NCHW"),
                                     precision=hi)
        return jax.nn.relu(y + b.reshape(1, -1, 1, 1))

    def pool(x):
        return lax.reduce_window(x, -jnp.inf, lax.max, (1, 1, 2, 2), (1, 1, 2, 2), "VALID")

    x = pool(conv(x_nchw, p["conv1_w"], p["conv1_b"]))
    x = pool(conv(x, p["conv2_w"], p["conv2_b"]))
    x = x.reshape(x.shape[0], -1)
    x = jax.nn.relu(jnp.dot(x, p["fc1_w"].T, precision=hi) + p["fc1_b"])
    x = jax.nn.relu(jnp.dot(x, p["fc2_w"].T, precision=hi) + p["fc2_b"])
    return jnp.dot(x, p["fc3_w"].T, precision=hi) + p["fc3_b"]


if __name__ == "__main__":
    key = jax.random.PRNGKey(0)
    k_params, k_x = jax.random.split(key)
    params = init_params(k_params)
    kparams = prepare_params(params)        # one-time weight repack (outside jit)

    # Forward implies 32x32 spatial input (16*5*5 flatten after two conv+pool stages).
    x = jax.random.normal(k_x, (2, 3, 32, 32), jnp.float32)

    out = jax.block_until_ready(lenet_forward(x, kparams))
    assert out.shape == (2, 10) and out.dtype == jnp.float32

    ref = jax.block_until_ready(lenet_reference(x, params))
    max_err = float(jnp.max(jnp.abs(out - ref)))
    assert jnp.allclose(out, ref, rtol=2e-3, atol=2e-3), f"max abs err {max_err}"

    print("KERNEL_OK")
</pallas_src>

<mosaic_0001>
module attributes {stable_mosaic.version = 11 : i64} {
  func.func @_conv_relu_pool_kernel(%arg0: i32, %arg1: memref<4x56x80xf32, #tpu.memory_space<vmem>>, %arg2: memref<80x8xf32, #tpu.memory_space<vmem>>, %arg3: memref<1x8xf32, #tpu.memory_space<vmem>>, %arg4: memref<56x8xf32, #tpu.memory_space<vmem>>) attributes {dimension_semantics = [#tpu.dimension_semantics<parallel>], iteration_bounds = array<i64: 7>, scalar_prefetch = 0 : i64, scratch_operands = 0 : i64, tpu.core_type = #tpu.core_type<tc>, window_params = [{transform_indices = @transform_0, window_bounds = array<i64: 4, 56, 80>}, {pipeline_mode = #tpu.pipeline_mode<synchronous>, transform_indices = @transform_1, window_bounds = array<i64: 80, 8>}, {pipeline_mode = #tpu.pipeline_mode<synchronous>, transform_indices = @transform_2, window_bounds = array<i64: 1, 8>}, {transform_indices = @transform_3, window_bounds = array<i64: 56, 8>}]} {
    %c0 = arith.constant 0 : index
    %c0_0 = arith.constant 0 : index
    %0 = vector.load %arg2[%c0, %c0_0] : memref<80x8xf32, #tpu.memory_space<vmem>>, vector<80x8xf32>
    %c0_1 = arith.constant 0 : index
    %c0_2 = arith.constant 0 : index
    %c0_3 = arith.constant 0 : index
    %1 = vector.load %arg1[%c0_1, %c0_2, %c0_3] : memref<4x56x80xf32, #tpu.memory_space<vmem>>, vector<4x56x80xf32>
    %2 = vector.shape_cast %1 : vector<4x56x80xf32> to vector<224x80xf32>
    %cst = arith.constant dense<0.000000e+00> : vector<224x8xf32>
    %3 = tpu.matmul %2, %0, %cst {dimension_numbers = #tpu.dot_dimension_numbers<[1], [0], [0], [1], [0, 0, 1, 1], [], []>} : vector<224x80xf32>, vector<80x8xf32>, vector<224x8xf32> -> vector<224x8xf32>
    %4 = vector.shape_cast %3 : vector<224x8xf32> to vector<4x56x8xf32>
    %cst_4 = arith.constant dense<0xFF800000> : vector<56x8xf32>
    %5 = vector.multi_reduction <maximumf>, %4, %cst_4 [0] : vector<4x56x8xf32> to vector<56x8xf32>
    %c0_5 = arith.constant 0 : index
    %c0_6 = arith.constant 0 : index
    %6 = vector.load %arg3[%c0_5, %c0_6] : memref<1x8xf32, #tpu.memory_space<vmem>>, vector<1x8xf32>
    %7 = vector.broadcast %6 : vector<1x8xf32> to vector<56x8xf32>
    %8 = arith.addf %5, %7 : vector<56x8xf32>
    %cst_7 = arith.constant 0.000000e+00 : f32
    %9 = vector.broadcast %cst_7 : f32 to vector<56x8xf32>
    %10 = arith.maximumf %8, %9 : vector<56x8xf32>
    %c0_8 = arith.constant 0 : index
    %c0_9 = arith.constant 0 : index
    %11 = vector.load %arg4[%c0_8, %c0_9] : memref<56x8xf32, #tpu.memory_space<vmem>>, vector<56x8xf32>
    tpu.vector_store %arg4[%c0_8, %c0_9], %10 {strides = array<i32>} : memref<56x8xf32, #tpu.memory_space<vmem>>, vector<56x8xf32>,
    return
  }
  func.func @transform_0(%arg0: i32) -> (i32, i32, i32) {
    %c0_i32 = arith.constant 0 : i32
    %c0_i32_0 = arith.constant 0 : i32
    %c0_i32_1 = arith.constant 0 : i32
    return %c0_i32, %arg0, %c0_i32_0 : i32, i32, i32
  }
  func.func @transform_1(%arg0: i32) -> (i32, i32) {
    %c0_i32 = arith.constant 0 : i32
    %c0_i32_0 = arith.constant 0 : i32
    %c0_i32_1 = arith.constant 0 : i32
    return %c0_i32, %c0_i32_0 : i32, i32
  }
  func.func @transform_2(%arg0: i32) -> (i32, i32) {
    %c0_i32 = arith.constant 0 : i32
    %c0_i32_0 = arith.constant 0 : i32
    %c0_i32_1 = arith.constant 0 : i32
    return %c0_i32, %c0_i32_0 : i32, i32
  }
  func.func @transform_3(%arg0: i32) -> (i32, i32) {
    %c0_i32 = arith.constant 0 : i32
    %c0_i32_0 = arith.constant 0 : i32
    return %arg0, %c0_i32 : i32, i32
  }
}

module attributes {stable_mosaic.version = 11 : i64} {
  func.func @_conv_relu_pool_kernel(%arg0: i32, %arg1: memref<4x50x200xf32, #tpu.memory_space<vmem>>, %arg2: memref<200x16xf32, #tpu.memory_space<vmem>>, %arg3: memref<1x16xf32, #tpu.memory_space<vmem>>, %arg4: memref<50x16xf32, #tpu.memory_space<vmem>>) attributes {dimension_semantics = [#tpu.dimension_semantics<parallel>], iteration_bounds = array<i64: 1>, scalar_prefetch = 0 : i64, scratch_operands = 0 : i64, tpu.core_type = #tpu.core_type<tc>, window_params = [{transform_indices = @transform_0, window_bounds = array<i64: 4, 50, 200>}, {pipeline_mode = #tpu.pipeline_mode<synchronous>, transform_indices = @transform_1, window_bounds = array<i64: 200, 16>}, {pipeline_mode = #tpu.pipeline_mode<synchronous>, transform_indices = @transform_2, window_bounds = array<i64: 1, 16>}, {transform_indices = @transform_3, window_bounds = array<i64: 50, 16>}]} {
    %c0 = arith.constant 0 : index
    %c0_0 = arith.constant 0 : index
    %0 = vector.load %arg2[%c0, %c0_0] : memref<200x16xf32, #tpu.memory_space<vmem>>, vector<200x16xf32>
    %c0_1 = arith.constant 0 : index
    %c0_2 = arith.constant 0 : index
    %c0_3 = arith.constant 0 : index
    %1 = vector.load %arg1[%c0_1, %c0_2, %c0_3] : memref<4x50x200xf32, #tpu.memory_space<vmem>>, vector<1x50x200xf32>
    %2 = vector.shape_cast %1 : vector<1x50x200xf32> to vector<50x200xf32>
    %cst = arith.constant dense<0.000000e+00> : vector<50x16xf32>
    %3 = tpu.matmul %2, %0, %cst {dimension_numbers = #tpu.dot_dimension_numbers<[1], [0], [0], [1], [0, 0, 1, 1], [], []>} : vector<50x200xf32>, vector<200x16xf32>, vector<50x16xf32> -> vector<50x16xf32>
    %c1 = arith.constant 1 : index
    %c0_4 = arith.constant 0 : index
    %c0_5 = arith.constant 0 : index
    %4 = vector.load %arg1[%c1, %c0_4, %c0_5] : memref<4x50x200xf32, #tpu.memory_space<vmem>>, vector<1x50x200xf32>
    %5 = vector.shape_cast %4 : vector<1x50x200xf32> to vector<50x200xf32>
    %cst_6 = arith.constant dense<0.000000e+00> : vector<50x16xf32>
    %6 = tpu.matmul %5, %0, %cst_6 {dimension_numbers = #tpu.dot_dimension_numbers<[1], [0], [0], [1], [0, 0, 1, 1], [], []>} : vector<50x200xf32>, vector<200x16xf32>, vector<50x16xf32> -> vector<50x16xf32>
    %7 = arith.maximumf %3, %6 : vector<50x16xf32>
    %c2 = arith.constant 2 : index
    %c0_7 = arith.constant 0 : index
    %c0_8 = arith.constant 0 : index
    %8 = vector.load %arg1[%c2, %c0_7, %c0_8] : memref<4x50x200xf32, #tpu.memory_space<vmem>>, vector<1x50x200xf32>
    %9 = vector.shape_cast %8 : vector<1x50x200xf32> to vector<50x200xf32>
    %cst_9 = arith.constant dense<0.000000e+00> : vector<50x16xf32>
    %10 = tpu.matmul %9, %0, %cst_9 {dimension_numbers = #tpu.dot_dimension_numbers<[1], [0], [0], [1], [0, 0, 1, 1], [], []>} : vector<50x200xf32>, vector<200x16xf32>, vector<50x16xf32> -> vector<50x16xf32>
    %11 = arith.maximumf %7, %10 : vector<50x16xf32>
    %c3 = arith.constant 3 : index
    %c0_10 = arith.constant 0 : index
    %c0_11 = arith.constant 0 : index
    %12 = vector.load %arg1[%c3, %c0_10, %c0_11] : memref<4x50x200xf32, #tpu.memory_space<vmem>>, vector<1x50x200xf32>
    %13 = vector.shape_cast %12 : vector<1x50x200xf32> to vector<50x200xf32>
    %cst_12 = arith.constant dense<0.000000e+00> : vector<50x16xf32>
    %14 = tpu.matmul %13, %0, %cst_12 {dimension_numbers = #tpu.dot_dimension_numbers<[1], [0], [0], [1], [0, 0, 1, 1], [], []>} : vector<50x200xf32>, vector<200x16xf32>, vector<50x16xf32> -> vector<50x16xf32>
    %15 = arith.maximumf %11, %14 : vector<50x16xf32>
    %c0_13 = arith.constant 0 : index
    %c0_14 = arith.constant 0 : index
    %16 = vector.load %arg3[%c0_13, %c0_14] : memref<1x16xf32, #tpu.memory_space<vmem>>, vector<1x16xf32>
    %17 = vector.broadcast %16 : vector<1x16xf32> to vector<50x16xf32>
    %18 = arith.addf %15, %17 : vector<50x16xf32>
    %cst_15 = arith.constant 0.000000e+00 : f32
    %19 = vector.broadcast %cst_15 : f32 to vector<50x16xf32>
    %20 = arith.maximumf %18, %19 : vector<50x16xf32>
    %c0_16 = arith.constant 0 : index
    %c0_17 = arith.constant 0 : index
    %21 = vector.load %arg4[%c0_16, %c0_17] : memref<50x16xf32, #tpu.memory_space<vmem>>, vector<50x16xf32>
    tpu.vector_store %arg4[%c0_16, %c0_17], %20 {strides = array<i32>} : memref<50x16xf32, #tpu.memory_space<vmem>>, vector<50x16xf32>,
    return
  }
  func.func @transform_0(%arg0: i32) -> (i32, i32, i32) {
    %c0_i32 = arith.constant 0 : i32
    %c0_i32_0 = arith.constant 0 : i32
    %c0_i32_1 = arith.constant 0 : i32
    return %c0_i32, %arg0, %c0_i32_0 : i32, i32, i32
  }
  func.func @transform_1(%arg0: i32) -> (i32, i32) {
    %c0_i32 = arith.constant 0 : i32
    %c0_i32_0 = arith.constant 0 : i32
    %c0_i32_1 = arith.constant 0 : i32
    return %c0_i32, %c0_i32_0 : i32, i32
  }
  func.func @transform_2(%arg0: i32) -> (i32, i32) {
    %c0_i32 = arith.constant 0 : i32
    %c0_i32_0 = arith.constant 0 : i32
    %c0_i32_1 = arith.constant 0 : i32
    return %c0_i32, %c0_i32_0 : i32, i32
  }
  func.func @transform_3(%arg0: i32) -> (i32, i32) {
    %c0_i32 = arith.constant 0 : i32
    %c0_i32_0 = arith.constant 0 : i32
    return %arg0, %c0_i32 : i32, i32
  }
}

module attributes {stable_mosaic.version = 11 : i64} {
  func.func @_fc_kernel(%arg0: i32, %arg1: memref<2x400xf32, #tpu.memory_space<vmem>>, %arg2: memref<400x128xf32, #tpu.memory_space<vmem>>, %arg3: memref<1x128xf32, #tpu.memory_space<vmem>>, %arg4: memref<128x128xf32, #tpu.memory_space<vmem>>, %arg5: memref<1x128xf32, #tpu.memory_space<vmem>>, %arg6: memref<128x128xf32, #tpu.memory_space<vmem>>, %arg7: memref<1x128xf32, #tpu.memory_space<vmem>>, %arg8: memref<2x128xf32, #tpu.memory_space<vmem>>) attributes {dimension_semantics = [#tpu.dimension_semantics<parallel>], iteration_bounds = array<i64: 1>, scalar_prefetch = 0 : i64, scratch_operands = 0 : i64, tpu.core_type = #tpu.core_type<tc>, window_params = [{transform_indices = @transform_0, window_bounds = array<i64: 2, 400>}, {pipeline_mode = #tpu.pipeline_mode<synchronous>, transform_indices = @transform_1, window_bounds = array<i64: 400, 128>}, {pipeline_mode = #tpu.pipeline_mode<synchronous>, transform_indices = @transform_2, window_bounds = array<i64: 1, 128>}, {pipeline_mode = #tpu.pipeline_mode<synchronous>, transform_indices = @transform_3, window_bounds = array<i64: 128, 128>}, {pipeline_mode = #tpu.pipeline_mode<synchronous>, transform_indices = @transform_4, window_bounds = array<i64: 1, 128>}, {pipeline_mode = #tpu.pipeline_mode<synchronous>, transform_indices = @transform_5, window_bounds = array<i64: 128, 128>}, {pipeline_mode = #tpu.pipeline_mode<synchronous>, transform_indices = @transform_6, window_bounds = array<i64: 1, 128>}, {transform_indices = @transform_7, window_bounds = array<i64: 2, 128>}]} {
    %c0 = arith.constant 0 : index
    %c0_0 = arith.constant 0 : index
    %0 = vector.load %arg1[%c0, %c0_0] : memref<2x400xf32, #tpu.memory_space<vmem>>, vector<2x400xf32>
    %c0_1 = arith.constant 0 : index
    %c0_2 = arith.constant 0 : index
    %1 = vector.load %arg2[%c0_1, %c0_2] : memref<400x128xf32, #tpu.memory_space<vmem>>, vector<400x128xf32>
    %cst = arith.constant dense<0.000000e+00> : vector<2x128xf32>
    %2 = tpu.matmul %0, %1, %cst {dimension_numbers = #tpu.dot_dimension_numbers<[1], [0], [0], [1], [0, 0, 1, 1], [], []>} : vector<2x400xf32>, vector<400x128xf32>, vector<2x128xf32> -> vector<2x128xf32>
    %c0_3 = arith.constant 0 : index
    %c0_4 = arith.constant 0 : index
    %3 = vector.load %arg3[%c0_3, %c0_4] : memref<1x128xf32, #tpu.memory_space<vmem>>, vector<1x128xf32>
    %4 = vector.broadcast %3 : vector<1x128xf32> to vector<2x128xf32>
    %5 = arith.addf %2, %4 : vector<2x128xf32>
    %cst_5 = arith.constant 0.000000e+00 : f32
    %6 = vector.broadcast %cst_5 : f32 to vector<2x128xf32>
    %7 = arith.maximumf %5, %6 : vector<2x128xf32>
    %c0_6 = arith.constant 0 : index
    %c0_7 = arith.constant 0 : index
    %8 = vector.load %arg4[%c0_6, %c0_7] : memref<128x128xf32, #tpu.memory_space<vmem>>, vector<128x128xf32>
    %cst_8 = arith.constant dense<0.000000e+00> : vector<2x128xf32>
    %9 = tpu.matmul %7, %8, %cst_8 {dimension_numbers = #tpu.dot_dimension_numbers<[1], [0], [0], [1], [0, 0, 1, 1], [], []>} : vector<2x128xf32>, vector<128x128xf32>, vector<2x128xf32> -> vector<2x128xf32>
    %c0_9 = arith.constant 0 : index
    %c0_10 = arith.constant 0 : index
    %10 = vector.load %arg5[%c0_9, %c0_10] : memref<1x128xf32, #tpu.memory_space<vmem>>, vector<1x128xf32>
    %11 = vector.broadcast %10 : vector<1x128xf32> to vector<2x128xf32>
    %12 = arith.addf %9, %11 : vector<2x128xf32>
    %cst_11 = arith.constant 0.000000e+00 : f32
    %13 = vector.broadcast %cst_11 : f32 to vector<2x128xf32>
    %14 = arith.maximumf %12, %13 : vector<2x128xf32>
    %c0_12 = arith.constant 0 : index
    %c0_13 = arith.constant 0 : index
    %15 = vector.load %arg6[%c0_12, %c0_13] : memref<128x128xf32, #tpu.memory_space<vmem>>, vector<128x128xf32>
    %cst_14 = arith.constant dense<0.000000e+00> : vector<2x128xf32>
    %16 = tpu.matmul %14, %15, %cst_14 {dimension_numbers = #tpu.dot_dimension_numbers<[1], [0], [0], [1], [0, 0, 1, 1], [], []>} : vector<2x128xf32>, vector<128x128xf32>, vector<2x128xf32> -> vector<2x128xf32>
    %c0_15 = arith.constant 0 : index
    %c0_16 = arith.constant 0 : index
    %17 = vector.load %arg7[%c0_15, %c0_16] : memref<1x128xf32, #tpu.memory_space<vmem>>, vector<1x128xf32>
    %18 = vector.broadcast %17 : vector<1x128xf32> to vector<2x128xf32>
    %19 = arith.addf %16, %18 : vector<2x128xf32>
    %c0_17 = arith.constant 0 : index
    %c0_18 = arith.constant 0 : index
    %20 = vector.load %arg8[%c0_17, %c0_18] : memref<2x128xf32, #tpu.memory_space<vmem>>, vector<2x128xf32>
    tpu.vector_store %arg8[%c0_17, %c0_18], %19 {strides = array<i32>} : memref<2x128xf32, #tpu.memory_space<vmem>>, vector<2x128xf32>,
    return
  }
  func.func @transform_0(%arg0: i32) -> (i32, i32) {
    %c0_i32 = arith.constant 0 : i32
    %c0_i32_0 = arith.constant 0 : i32
    return %arg0, %c0_i32 : i32, i32
  }
  func.func @transform_1(%arg0: i32) -> (i32, i32) {
    %c0_i32 = arith.constant 0 : i32
    %c0_i32_0 = arith.constant 0 : i32
    %c0_i32_1 = arith.constant 0 : i32
    return %c0_i32, %c0_i32_0 : i32, i32
  }
  func.func @transform_2(%arg0: i32) -> (i32, i32) {
    %c0_i32 = arith.constant 0 : i32
    %c0_i32_0 = arith.constant 0 : i32
    %c0_i32_1 = arith.constant 0 : i32
    return %c0_i32, %c0_i32_0 : i32, i32
  }
  func.func @transform_3(%arg0: i32) -> (i32, i32) {
    %c0_i32 = arith.constant 0 : i32
    %c0_i32_0 = arith.constant 0 : i32
    %c0_i32_1 = arith.constant 0 : i32
    return %c0_i32, %c0_i32_0 : i32, i32
  }
  func.func @transform_4(%arg0: i32) -> (i32, i32) {
    %c0_i32 = arith.constant 0 : i32
    %c0_i32_0 = arith.constant 0 : i32
    %c0_i32_1 = arith.constant 0 : i32
    return %c0_i32, %c0_i32_0 : i32, i32
  }
  func.func @transform_5(%arg0: i32) -> (i32, i32) {
    %c0_i32 = arith.constant 0 : i32
    %c0_i32_0 = arith.constant 0 : i32
    %c0_i32_1 = arith.constant 0 : i32
    return %c0_i32, %c0_i32_0 : i32, i32
  }
  func.func @transform_6(%arg0: i32) -> (i32, i32) {
    %c0_i32 = arith.constant 0 : i32
    %c0_i32_0 = arith.constant 0 : i32
    %c0_i32_1 = arith.constant 0 : i32
    return %c0_i32, %c0_i32_0 : i32, i32
  }
  func.func @transform_7(%arg0: i32) -> (i32, i32) {
    %c0_i32 = arith.constant 0 : i32
    %c0_i32_0 = arith.constant 0 : i32
    return %arg0, %c0_i32 : i32, i32
  }
}

</mosaic_0001>

<llo_original>
// kernel: lenet_forward.3
$region0: #{lenet_forward.3}
  #allocation0 [shape = 'u32[]', space=smem, size = 0x4, offset = 0x4, fixed_abs, tag = 'smem constant byte address 0x4 - core index']
  #allocation1 [shape = 'u32[144,128]{1,0:T(1,128)}', space=vmem, size = 0x12000, scoped, tag = 'internal scratch']
  %s0 = inlined_call_operand.vmem [shape: f32[4,392,80], index: 0, kind: input, shape index: {}]
  %s1 = inlined_call_operand.vmem [shape: f32[80,8], index: 1, kind: input, shape index: {}]
  %s2 = inlined_call_operand.vmem [shape: f32[1,8], index: 2, kind: input, shape index: {}]
  %s3 = inlined_call_operand.vmem [shape: f32[392,8], index: 3, kind: output, shape index: {}]
  %s4 = sld [smem:[#allocation0]]
  $region83: #{lenet_forward.3} parent=0
    _
  %s6 = ssub.s32 1, %s4
  %s7 = scalar_select 0, %s6, %s4
  $region1: #{lenet_forward.3} parent=0
    #allocation2 [shape = 'u8[229376]{0}', space=vmem, size = 0x38000, scoped, tag = 'input window, operand 0']
    loop: start=0, step=1, limit=9
    $region2: #{lenet_forward.3} parent=1 // loop_pre_header
      _
    $region3: #{lenet_forward.3} parent=1 // loop_header
      %s9 = sphi 0, %s13
      %p10 = scmp.ge.s32.totalorder %s9, 9
      %s19 = sphi 0, %s21
      %s22 = sphi 0, %s19
      %s23 = sphi 0, %s22
      %s39 = sphi 0, %s23
      %s43 = sphi 0, %s43
      %s45 = sphi 0, %s43
      %s46 = sphi 0, %s45
      %s60 = sphi 0, %s46
      %s64 = sphi 0, %s64
      %s66 = sphi 0, %s64
      %s67 = sphi 0, %s66
      %s81 = sphi 0, %s67
      %s87 = sphi 0, %s89
      %s90 = sphi 0, %s87
      %s91 = sphi 0, %s90
      %s107 = sphi 0, %s91
    $region4: #{lenet_forward.3} parent=1 // loop_header_branch
      %12 = sbr.rel (%p10) target = $region8
    $region5: #{lenet_forward.3} parent=1 // loop_body
      %s14 = ssub.s32 %s9, 1
      %s15 = ssub.s32 %s9, 2
      %s16 = sadd.s32 %s9, 1
      %s17 = ssub.s32 %s9, %s16
      %p18 = scmp.eq.s32.totalorder %s17, 0
      %s20 = sadd.s32 %s19, 1
      %s21 = scalar_select %p18, %s19, %s20
      %p24 = pneg %p18
      %p25 = scmp.eq.s32.totalorder %s9, 6
      %p26 = por %p24, %p25
      %p27 = scmp.ne.s32.totalorder %s19, %s22
      %p28 = scmp.eq.s32.totalorder %s9, 0
      %p29 = por %p27, %p28
      %p30 = scmp.ne.s32.totalorder %s19, %s22
      %p31 = scmp.eq.s32.totalorder %s14, 6
      %p32 = por %p30, %p31
      %p33 = scmp.ne.s32.totalorder %s22, %s23
      %p34 = scmp.eq.s32.totalorder %s14, 0
      %p35 = por %p33, %p34
      %p36 = scmp.ne.s32.totalorder %s22, %s23
      %p37 = scmp.eq.s32.totalorder %s15, 6
      %p38 = por %p36, %p37
      %p40 = scmp.ne.s32.totalorder %s23, %s39
      %p41 = scmp.eq.s32.totalorder %s15, 0
      %p42 = por %p40, %p41
      %s44 = sadd.s32 %s43, 1
      %p47 = scmp.eq.s32.totalorder %s9, 6
      %p48 = scmp.ne.s32.totalorder %s43, %s45
      %p49 = scmp.eq.s32.totalorder %s9, 0
      %p50 = por %p48, %p49
      %p51 = scmp.ne.s32.totalorder %s43, %s45
      %p52 = scmp.eq.s32.totalorder %s14, 6
      %p53 = por %p51, %p52
      %p54 = scmp.ne.s32.totalorder %s45, %s46
      %p55 = scmp.eq.s32.totalorder %s14, 0
      %p56 = por %p54, %p55
      %p57 = scmp.ne.s32.totalorder %s45, %s46
      %p58 = scmp.eq.s32.totalorder %s15, 6
      %p59 = por %p57, %p58
      %p61 = scmp.ne.s32.totalorder %s46, %s60
      %p62 = scmp.eq.s32.totalorder %s15, 0
      %p63 = por %p61, %p62
      %s65 = sadd.s32 %s64, 1
      %p68 = scmp.eq.s32.totalorder %s9, 6
      %p69 = scmp.ne.s32.totalorder %s64, %s66
      %p70 = scmp.eq.s32.totalorder %s9, 0
      %p71 = por %p69, %p70
      %p72 = scmp.ne.s32.totalorder %s64, %s66
      %p73 = scmp.eq.s32.totalorder %s14, 6
      %p74 = por %p72, %p73
      %p75 = scmp.ne.s32.totalorder %s66, %s67
      %p76 = scmp.eq.s32.totalorder %s14, 0
      %p77 = por %p75, %p76
      %p78 = scmp.ne.s32.totalorder %s66, %s67
      %p79 = scmp.eq.s32.totalorder %s15, 6
      %p80 = por %p78, %p79
      %p82 = scmp.ne.s32.totalorder %s67, %s81
      %p83 = scmp.eq.s32.totalorder %s15, 0
      %p84 = por %p82, %p83
      %s85 = ssub.s32 %s9, %s16
      %p86 = scmp.eq.s32.totalorder %s85, 0
      %s88 = sadd.s32 %s87, 1
      %s89 = scalar_select %p86, %s87, %s88
      %p92 = pneg %p86
      %p93 = scmp.eq.s32.totalorder %s9, 6
      %p94 = por %p92, %p93
      %p95 = scmp.ne.s32.totalorder %s87, %s90
      %p96 = scmp.eq.s32.totalorder %s9, 0
      %p97 = por %p95, %p96
      %p98 = scmp.ne.s32.totalorder %s87, %s90
      %p99 = scmp.eq.s32.totalorder %s14, 6
      %p100 = por %p98, %p99
      %p101 = scmp.ne.s32.totalorder %s90, %s91
      %p102 = scmp.eq.s32.totalorder %s14, 0
      %p103 = por %p101, %p102
      %p104 = scmp.ne.s32.totalorder %s90, %s91
      %p105 = scmp.eq.s32.totalorder %s15, 6
      %p106 = por %p104, %p105
      %p108 = scmp.ne.s32.totalorder %s91, %s107
      %p109 = scmp.eq.s32.totalorder %s15, 0
      %p110 = por %p108, %p109
      %p111 = scmp.le.s32.totalorder 1, %s9
      %p112 = scmp.lt.s32.totalorder %s9, 8
      %p113 = pnand %p111, %p112
      %p114 = pneg %p113
      // Predicated region
      $region9: #{lenet_forward.3} parent=5 // pred_check
        _
      $region10: #{lenet_forward.3} parent=5 // pred_check_branch
        %116 = sbr.rel (%p113) target = $region12
      $region11: #{lenet_forward.3} parent=5 // pred_region
        %s117 = ssub.s32 %s9, 1
        // Predicated region
        $region13: #{lenet_forward.3} parent=11 // pred_check
          %p118 = pneg %p56
        $region14: #{lenet_forward.3} parent=11 // pred_check_branch
          %120 = sbr.rel (%p118) target = $region16
        $region15: #{lenet_forward.3} parent=11 // pred_region
          _
        $region16: #{lenet_forward.3} parent=11 // pred_fallthru
          _
        // Predicated region
        $region17: #{lenet_forward.3} parent=11 // pred_check
          %p121 = pneg %p77
        $region18: #{lenet_forward.3} parent=11 // pred_check_branch
          %123 = sbr.rel (%p121) target = $region20
        $region19: #{lenet_forward.3} parent=11 // pred_region
          _
        $region20: #{lenet_forward.3} parent=11 // pred_fallthru
          _
      $region12: #{lenet_forward.3} parent=5 // pred_fallthru
        _
      %p124 = scmp.lt.s32.totalorder %s9, 7
      // Predicated region
      $region21: #{lenet_forward.3} parent=5 // pred_check
        %p125 = pneg %p124
      $region22: #{lenet_forward.3} parent=5 // pred_check_branch
        %127 = sbr.rel (%p125) target = $region24
      $region23: #{lenet_forward.3} parent=5 // pred_region
        // Predicated region
        $region25: #{lenet_forward.3} parent=23 // pred_check
          %p128 = pneg %p29
        $region26: #{lenet_forward.3} parent=23 // pred_check_branch
          %130 = sbr.rel (%p128) target = $region28
        $region27: #{lenet_forward.3} parent=23 // pred_region
          %s131 = sand.u32 %s19, 1
          %s132 = sand.u32 %s19, 1
          %s133 = smul.addr %s132, 224
          %s134 = scalar_lea.vmem [#allocation2], %s133
          %s135 = smul.u32 7, %s9
          %s136 = smul.addr %s135, 8
          %s137 = scalar_lea.vmem %s0, %s136
          // Predicated region
          $region29: #{lenet_forward.3} parent=27 // pred_check
            _
          $region30: #{lenet_forward.3} parent=27 // pred_check_branch
            %139 = sbr.rel (0) target = $region32
          $region31: #{lenet_forward.3} parent=27 // pred_region
            // Predicated region
            $region33: #{lenet_forward.3} parent=31 // pred_check
              _
            $region34: #{lenet_forward.3} parent=31 // pred_check_branch
              %141 = sbr.rel (0) target = $region36
            $region35: #{lenet_forward.3} parent=31 // pred_region
              // Predicated region
              $region48: #{lenet_forward.3} parent=35 // pred_check
                _
              $region49: #{lenet_forward.3} parent=35 // pred_check_branch
                %211 = sbr.rel (0) target = $region51
              $region50: #{lenet_forward.3} parent=35 // pred_region
                loop: start=0, step=1, limit=1
                $region52: #{lenet_forward.3} parent=50 // loop_pre_header
                  _
                $region53: #{lenet_forward.3} parent=50 // loop_header
                  %s213 = sphi 0, %s217
                  %p214 = scmp.ge.s32.totalorder %s213, 1
                  %s218 = sphi %s137, %s137
                  %s219 = sphi %s134, %s134
                $region54: #{lenet_forward.3} parent=50 // loop_header_branch
                  %216 = sbr.rel (%p214) target = $region58
                $region55: #{lenet_forward.3} parent=50 // loop_body
                  %v220 = vld [vmem:[%s218] sm:$0xff]
                  %221 = vst [vmem:[%s219] sm:$0xff] %v220
                  %v222 = vld [vmem:[%s218 + $0x8] sm:$0xff]
                  %223 = vst [vmem:[%s219 + $0x8] sm:$0xff] %v222
                  %v224 = vld [vmem:[%s218 + $0x10] sm:$0xff]
                  %225 = vst [vmem:[%s219 + $0x10] sm:$0xff] %v224
                  %v226 = vld [vmem:[%s218 + $0x18] sm:$0xff]
                  %227 = vst [vmem:[%s219 + $0x18] sm:$0xff] %v226
                  %v228 = vld [vmem:[%s218 + $0x20] sm:$0xff]
                  %229 = vst [vmem:[%s219 + $0x20] sm:$0xff] %v228
                  %v230 = vld [vmem:[%s218 + $0x28] sm:$0xff]
                  %231 = vst [vmem:[%s219 + $0x28] sm:$0xff] %v230
                  %v232 = vld [vmem:[%s218 + $0x30] sm:$0xff]
                  %233 = vst [vmem:[%s219 + $0x30] sm:$0xff] %v232
                  %v234 = vld [vmem:[%s218 + $0x188] sm:$0xff]
                  %235 = vst [vmem:[%s219 + $0x38] sm:$0xff] %v234
                  %v236 = vld [vmem:[%s218 + $0x190] sm:$0xff]
                  %237 = vst [vmem:[%s219 + $0x40] sm:$0xff] %v236
                  %v238 = vld [vmem:[%s218 + $0x198] sm:$0xff]
                  %239 = vst [vmem:[%s219 + $0x48] sm:$0xff] %v238
                  %v240 = vld [vmem:[%s218 + $0x1a0] sm:$0xff]
                  %241 = vst [vmem:[%s219 + $0x50] sm:$0xff] %v240
                  %v242 = vld [vmem:[%s218 + $0x1a8] sm:$0xff]
                  %243 = vst [vmem:[%s219 + $0x58] sm:$0xff] %v242
                  %v244 = vld [vmem:[%s218 + $0x1b0] sm:$0xff]
                  %245 = vst [vmem:[%s219 + $0x60] sm:$0xff] %v244
                  %v246 = vld [vmem:[%s218 + $0x1b8] sm:$0xff]
                  %247 = vst [vmem:[%s219 + $0x68] sm:$0xff] %v246
                  %v248 = vld [vmem:[%s218 + $0x310] sm:$0xff]
                  %249 = vst [vmem:[%s219 + $0x70] sm:$0xff] %v248
                  %v250 = vld [vmem:[%s218 + $0x318] sm:$0xff]
                  %251 = vst [vmem:[%s219 + $0x78] sm:$0xff] %v250
                  %v252 = vld [vmem:[%s218 + $0x320] sm:$0xff]
                  %253 = vst [vmem:[%s219 + $0x80] sm:$0xff] %v252
                  %v254 = vld [vmem:[%s218 + $0x328] sm:$0xff]
                  %255 = vst [vmem:[%s219 + $0x88] sm:$0xff] %v254
                  %v256 = vld [vmem:[%s218 + $0x330] sm:$0xff]
                  %257 = vst [vmem:[%s219 + $0x90] sm:$0xff] %v256
                  %v258 = vld [vmem:[%s218 + $0x338] sm:$0xff]
                  %259 = vst [vmem:[%s219 + $0x98] sm:$0xff] %v258
                  %v260 = vld [vmem:[%s218 + $0x340] sm:$0xff]
                  %261 = vst [vmem:[%s219 + $0xa0] sm:$0xff] %v260
                  %v262 = vld [vmem:[%s218 + $0x498] sm:$0xff]
                  %263 = vst [vmem:[%s219 + $0xa8] sm:$0xff] %v262
                  %v264 = vld [vmem:[%s218 + $0x4a0] sm:$0xff]
                  %265 = vst [vmem:[%s219 + $0xb0] sm:$0xff] %v264
                  %v266 = vld [vmem:[%s218 + $0x4a8] sm:$0xff]
                  %267 = vst [vmem:[%s219 + $0xb8] sm:$0xff] %v266
                  %v268 = vld [vmem:[%s218 + $0x4b0] sm:$0xff]
                  %269 = vst [vmem:[%s219 + $0xc0] sm:$0xff] %v268
                  %v270 = vld [vmem:[%s218 + $0x4b8] sm:$0xff]
                  %271 = vst [vmem:[%s219 + $0xc8] sm:$0xff] %v270
                  %v272 = vld [vmem:[%s218 + $0x4c0] sm:$0xff]
                  %273 = vst [vmem:[%s219 + $0xd0] sm:$0xff] %v272
                  %v274 = vld [vmem:[%s218 + $0x4c8] sm:$0xff]
                  %275 = vst [vmem:[%s219 + $0xd8] sm:$0xff] %v274
                $region56: #{lenet_forward.3} parent=50 // loop_footer
                  %s217 = sadd.s32 1, %s213
                $region57: #{lenet_forward.3} parent=50 // loop_footer_branch
                  %212 = sbr.rel target = $region53
                $region58: #{lenet_forward.3} parent=50 // loop_exit
                  _
              $region51: #{lenet_forward.3} parent=35 // pred_fallthru
                _
              // Predicated region
              $region59: #{lenet_forward.3} parent=35 // pred_check
                _
              $region60: #{lenet_forward.3} parent=35 // pred_check_branch
                %277 = sbr.rel target = $region62
              $region61: #{lenet_forward.3} parent=35 // pred_region
                _
              $region62: #{lenet_forward.3} parent=35 // pred_fallthru
                _
            $region36: #{lenet_forward.3} parent=31 // pred_fallthru
              _
            // Predicated region
            $region37: #{lenet_forward.3} parent=31 // pred_check
              _
            $region38: #{lenet_forward.3} parent=31 // pred_check_branch
              %143 = sbr.rel target = $region40
            $region39: #{lenet_forward.3} parent=31 // pred_region
              %s145 = ssub.s32 256, 1
              loop: start=0, step=1, limit=1
              $region41: #{lenet_forward.3} parent=39 // loop_pre_header
                _
              $region42: #{lenet_forward.3} parent=39 // loop_header
                %s147 = sphi 0, %s151
                %p148 = scmp.ge.s32.totalorder %s147, 1
                %s152 = sphi %s137, %s137
                %s153 = sphi %s134, %s134
              $region43: #{lenet_forward.3} parent=39 // loop_header_branch
                %150 = sbr.rel (%p148) target = $region47
              $region44: #{lenet_forward.3} parent=39 // loop_body
                %v154 = vld [vmem:[%s152] sm:%s145]
                %155 = vst [vmem:[%s153] sm:%s145] %v154
                %v156 = vld [vmem:[%s152 + $0x8] sm:%s145]
                %157 = vst [vmem:[%s153 + $0x8] sm:%s145] %v156
                %v158 = vld [vmem:[%s152 + $0x10] sm:%s145]
                %159 = vst [vmem:[%s153 + $0x10] sm:%s145] %v158
                %v160 = vld [vmem:[%s152 + $0x18] sm:%s145]
                %161 = vst [vmem:[%s153 + $0x18] sm:%s145] %v160
                %v162 = vld [vmem:[%s152 + $0x20] sm:%s145]
                %163 = vst [vmem:[%s153 + $0x20] sm:%s145] %v162
                %v164 = vld [vmem:[%s152 + $0x28] sm:%s145]
                %165 = vst [vmem:[%s153 + $0x28] sm:%s145] %v164
                %v166 = vld [vmem:[%s152 + $0x30] sm:%s145]
                %167 = vst [vmem:[%s153 + $0x30] sm:%s145] %v166
                %v168 = vld [vmem:[%s152 + $0x188] sm:%s145]
                %169 = vst [vmem:[%s153 + $0x38] sm:%s145] %v168
                %v170 = vld [vmem:[%s152 + $0x190] sm:%s145]
                %171 = vst [vmem:[%s153 + $0x40] sm:%s145] %v170
                %v172 = vld [vmem:[%s152 + $0x198] sm:%s145]
                %173 = vst [vmem:[%s153 + $0x48] sm:%s145] %v172
                %v174 = vld [vmem:[%s152 + $0x1a0] sm:%s145]
                %175 = vst [vmem:[%s153 + $0x50] sm:%s145] %v174
                %v176 = vld [vmem:[%s152 + $0x1a8] sm:%s145]
                %177 = vst [vmem:[%s153 + $0x58] sm:%s145] %v176
                %v178 = vld [vmem:[%s152 + $0x1b0] sm:%s145]
                %179 = vst [vmem:[%s153 + $0x60] sm:%s145] %v178
                %v180 = vld [vmem:[%s152 + $0x1b8] sm:%s145]
                %181 = vst [vmem:[%s153 + $0x68] sm:%s145] %v180
                %v182 = vld [vmem:[%s152 + $0x310] sm:%s145]
                %183 = vst [vmem:[%s153 + $0x70] sm:%s145] %v182
                %v184 = vld [vmem:[%s152 + $0x318] sm:%s145]
                %185 = vst [vmem:[%s153 + $0x78] sm:%s145] %v184
                %v186 = vld [vmem:[%s152 + $0x320] sm:%s145]
                %187 = vst [vmem:[%s153 + $0x80] sm:%s145] %v186
                %v188 = vld [vmem:[%s152 + $0x328] sm:%s145]
                %189 = vst [vmem:[%s153 + $0x88] sm:%s145] %v188
                %v190 = vld [vmem:[%s152 + $0x330] sm:%s145]
                %191 = vst [vmem:[%s153 + $0x90] sm:%s145] %v190
                %v192 = vld [vmem:[%s152 + $0x338] sm:%s145]
                %193 = vst [vmem:[%s153 + $0x98] sm:%s145] %v192
                %v194 = vld [vmem:[%s152 + $0x340] sm:%s145]
                %195 = vst [vmem:[%s153 + $0xa0] sm:%s145] %v194
                %v196 = vld [vmem:[%s152 + $0x498] sm:%s145]
                %197 = vst [vmem:[%s153 + $0xa8] sm:%s145] %v196
                %v198 = vld [vmem:[%s152 + $0x4a0] sm:%s145]
                %199 = vst [vmem:[%s153 + $0xb0] sm:%s145] %v198
                %v200 = vld [vmem:[%s152 + $0x4a8] sm:%s145]
                %201 = vst [vmem:[%s153 + $0xb8] sm:%s145] %v200
                %v202 = vld [vmem:[%s152 + $0x4b0] sm:%s145]
                %203 = vst [vmem:[%s153 + $0xc0] sm:%s145] %v202
                %v204 = vld [vmem:[%s152 + $0x4b8] sm:%s145]
                %205 = vst [vmem:[%s153 + $0xc8] sm:%s145] %v204
                %v206 = vld [vmem:[%s152 + $0x4c0] sm:%s145]
                %207 = vst [vmem:[%s153 + $0xd0] sm:%s145] %v206
                %v208 = vld [vmem:[%s152 + $0x4c8] sm:%s145]
                %209 = vst [vmem:[%s153 + $0xd8] sm:%s145] %v208
              $region45: #{lenet_forward.3} parent=39 // loop_footer
                %s151 = sadd.s32 1, %s147
              $region46: #{lenet_forward.3} parent=39 // loop_footer_branch
                %146 = sbr.rel target = $region42
              $region47: #{lenet_forward.3} parent=39 // loop_exit
                _
            $region40: #{lenet_forward.3} parent=31 // pred_fallthru
              _
          $region32: #{lenet_forward.3} parent=27 // pred_fallthru
            _
          %278 = vnop
        $region28: #{lenet_forward.3} parent=23 // pred_fallthru
          _
      $region24: #{lenet_forward.3} parent=5 // pred_fallthru
        _
      %p279 = scmp.le.s32.totalorder 1, %s9
      %p280 = scmp.lt.s32.totalorder %s9, 8
      %p281 = pnand %p279, %p280
      %p282 = pneg %p281
      // Predicated region
      $region63: #{lenet_forward.3} parent=5 // pred_check
        _
      $region64: #{lenet_forward.3} parent=5 // pred_check_branch
        %284 = sbr.rel (%p281) target = $region66
      $region65: #{lenet_forward.3} parent=5 // pred_region
        %s285 = ssub.s32 %s9, 1
        %s286 = sand.u32 %s22, 1
        %s287 = sand.u32 %s22, 1
        %s288 = smul.addr %s287, 224
        %s289 = scalar_lea.vmem [#allocation2], %s288
        // Predicated region
        $region67: #{lenet_forward.3} parent=65 // pred_check
          %p290 = pneg %p35
        $region68: #{lenet_forward.3} parent=65 // pred_check_branch
          %292 = sbr.rel (%p290) target = $region70
        $region69: #{lenet_forward.3} parent=65 // pred_region
          _
        $region70: #{lenet_forward.3} parent=65 // pred_fallthru
          _
        %s293 = sand.u32 %s22, 1
        %s294 = sand.u32 %s22, 1
        %s295 = smul.addr %s294, 224
        %s296 = scalar_lea.vmem [#allocation2], %s295
        %p297 = pneg %p35
        %p298 = pneg %p32
        %p299 = pneg %p56
        %p300 = pneg %p53
        %p301 = pneg %p77
        %p302 = pneg %p74
        %p303 = pneg %p103
        %p304 = pneg %p100
        %s305 = smul.u32 7, %s14
        %p306 = scmp.lt.s32.totalorder %s305, 48
        %s307 = scalar_select %p306, %s305, 48
        %s308 = smul.addr %s307, 8
        %s309 = scalar_lea.vmem %s3, %s308
        %s310 = smul.u32 7, %s14
        %s311 = smul.u32 7, %s14
        %p312 = scmp.lt.s32.totalorder %s311, 48
        %s313 = scalar_select %p312, %s311, 48
        %s314 = smul.addr %s313, 8
        %s315 = scalar_lea.vmem %s3, %s314
        %s316 = smul.u32 7, %s14
        %v317 = vld [vmem:[%s1] sm:$0xff]
        %v318 = vld [vmem:[%s1 + $0x8] sm:$0xff]
        %v319 = vld [vmem:[%s1 + $0x10] sm:$0xff]
        %v320 = vld [vmem:[%s1 + $0x18] sm:$0xff]
        %v321 = vld [vmem:[%s1 + $0x20] sm:$0xff]
        %v322 = vld [vmem:[%s1 + $0x28] sm:$0xff]
        %v323 = vld [vmem:[%s1 + $0x30] sm:$0xff]
        %v324 = vld [vmem:[%s1 + $0x38] sm:$0xff]
        %v325 = vld [vmem:[%s1 + $0x40] sm:$0xff]
        %v326 = vld [vmem:[%s1 + $0x48] sm:$0xff]
        %v327 = vld [vmem:[%s289] sm:$0xff]
        %v328 = vld [vmem:[%s289 + $0x8] sm:$0xff]
        %v329 = vld [vmem:[%s289 + $0x10] sm:$0xff]
        %v330 = vld [vmem:[%s289 + $0x18] sm:$0xff]
        %v331 = vld [vmem:[%s289 + $0x20] sm:$0xff]
        %v332 = vld [vmem:[%s289 + $0x28] sm:$0xff]
        %v333 = vld [vmem:[%s289 + $0x30] sm:$0xff]
        %v334 = vld [vmem:[%s289 + $0x38] sm:$0xff]
        %v335 = vld [vmem:[%s289 + $0x40] sm:$0xff]
        %v336 = vld [vmem:[%s289 + $0x48] sm:$0xff]
        %v337 = vld [vmem:[%s289 + $0x50] sm:$0xff]
        %v338 = vld [vmem:[%s289 + $0x58] sm:$0xff]
        %v339 = vld [vmem:[%s289 + $0x60] sm:$0xff]
        %v340 = vld [vmem:[%s289 + $0x68] sm:$0xff]
        %v341 = vld [vmem:[%s289 + $0x70] sm:$0xff]
        %v342 = vld [vmem:[%s289 + $0x78] sm:$0xff]
        %v343 = vld [vmem:[%s289 + $0x80] sm:$0xff]
        %v344 = vld [vmem:[%s289 + $0x88] sm:$0xff]
        %v345 = vld [vmem:[%s289 + $0x90] sm:$0xff]
        %v346 = vld [vmem:[%s289 + $0x98] sm:$0xff]
        %v347 = vld [vmem:[%s289 + $0xa0] sm:$0xff]
        %v348 = vld [vmem:[%s289 + $0xa8] sm:$0xff]
        %v349 = vld [vmem:[%s289 + $0xb0] sm:$0xff]
        %v350 = vld [vmem:[%s289 + $0xb8] sm:$0xff]
        %v351 = vld [vmem:[%s289 + $0xc0] sm:$0xff]
        %v352 = vld [vmem:[%s289 + $0xc8] sm:$0xff]
        %v353 = vld [vmem:[%s289 + $0xd0] sm:$0xff]
        %v354 = vld [vmem:[%s289 + $0xd8] sm:$0xff]
        %vm355 = vcmask 654336
        %v357 = vsel %vm355, %v327, 0
        %v360 = vsel %vm355, %v328, 0
        %v363 = vsel %vm355, %v329, 0
        %v366 = vsel %vm355, %v330, 0
        %v369 = vsel %vm355, %v331, 0
        %v372 = vsel %vm355, %v332, 0
        %v375 = vsel %vm355, %v333, 0
        %v378 = vsel %vm355, %v334, 0
        %v381 = vsel %vm355, %v335, 0
        %v384 = vsel %vm355, %v336, 0
        %v387 = vsel %vm355, %v337, 0
        %v390 = vsel %vm355, %v338, 0
        %v393 = vsel %vm355, %v339, 0
        %v396 = vsel %vm355, %v340, 0
        %v399 = vsel %vm355, %v341, 0
        %v402 = vsel %vm355, %v342, 0
        %v405 = vsel %vm355, %v343, 0
        %v408 = vsel %vm355, %v344, 0
        %v411 = vsel %vm355, %v345, 0
        %v414 = vsel %vm355, %v346, 0
        %v417 = vsel %vm355, %v347, 0
        %v420 = vsel %vm355, %v348, 0
        %v423 = vsel %vm355, %v349, 0
        %v426 = vsel %vm355, %v350, 0
        %v429 = vsel %vm355, %v351, 0
        %v432 = vsel %vm355, %v352, 0
        %v435 = vsel %vm355, %v353, 0
        %v438 = vsel %vm355, %v354, 0
        %440 = vmatprep.subr.mxu0 0.0
        %441 = vmatpush1.msra.mxu0 0.0
        %442 = vmatprep.subr.mxu0 0.0
        %443 = vmatpush1.msra.mxu0 0.0
        %444 = vmatprep.subr.mxu0 0.0
        %445 = vmatpush1.msra.mxu0 0.0
        %446 = vmatprep.subr.mxu0 0.0
        %447 = vmatpush1.msra.mxu0 0.0
        %448 = vmatprep.subr.mxu0 0.0
        %449 = vmatpush1.msra.mxu0 0.0
        %450 = vmatprep.subr.mxu0 0.0
        %451 = vmatpush1.msra.mxu0 0.0
        %452 = vmatprep.subr.mxu0 0.0
        %453 = vmatpush1.msra.mxu0 %v326
        %454 = vmatprep.subr.mxu0 0.0
        %455 = vmatpush1.msra.mxu0 %v325
        %456 = vmatprep.subr.mxu0 0.0
        %457 = vmatpush1.msra.mxu0 %v324
        %458 = vmatprep.subr.mxu0 0.0
        %459 = vmatpush1.msra.mxu0 %v323
        %460 = vmatprep.subr.mxu0 0.0
        %461 = vmatpush1.msra.mxu0 %v322
        %462 = vmatprep.subr.mxu0 0.0
        %463 = vmatpush1.msra.mxu0 %v321
        %464 = vmatprep.subr.mxu0 0.0
        %465 = vmatpush1.msra.mxu0 %v320
        %466 = vmatprep.subr.mxu0 0.0
        %467 = vmatpush1.msra.mxu0 %v319
        %468 = vmatprep.subr.mxu0 0.0
        %469 = vmatpush1.msra.mxu0 %v318
        %470 = vmatprep.subr.mxu0 0.0
        %471 = vmatpush1.msra.mxu0 %v317
        %472 = vmatprep.subr.mxu0 0.0
        %473 = vmatpush2.msra.mxu0 0.0
        %474 = vmatprep.subr.mxu0 0.0
        %475 = vmatpush2.msra.mxu0 0.0
        %476 = vmatprep.subr.mxu0 0.0
        %477 = vmatpush2.msra.mxu0 0.0
        %478 = vmatprep.subr.mxu0 0.0
        %479 = vmatpush2.msra.mxu0 0.0
        %480 = vmatprep.subr.mxu0 0.0
        %481 = vmatpush2.msra.mxu0 0.0
        %482 = vmatprep.subr.mxu0 0.0
        %483 = vmatpush2.msra.mxu0 0.0
        %484 = vmatprep.subr.mxu0 0.0
        %485 = vmatpush2.msra.mxu0 0.0
        %486 = vmatprep.subr.mxu0 0.0
        %487 = vmatpush2.msra.mxu0 0.0
        %488 = vmatprep.subr.mxu0 0.0
        %489 = vmatpush2.msra.mxu0 0.0
        %490 = vmatprep.subr.mxu0 0.0
        %491 = vmatpush2.msra.mxu0 0.0
        %492 = vmatprep.subr.mxu0 0.0
        %493 = vmatpush2.msra.mxu0 0.0
        %494 = vmatprep.subr.mxu0 0.0
        %495 = vmatpush2.msra.mxu0 0.0
        %496 = vmatprep.subr.mxu0 0.0
        %497 = vmatpush2.msra.mxu0 0.0
        %498 = vmatprep.subr.mxu0 0.0
        %499 = vmatpush2.msra.mxu0 0.0
        %500 = vmatprep.subr.mxu0 0.0
        %501 = vmatpush2.msra.mxu0 0.0
        %502 = vmatprep.subr.mxu0 0.0
        %503 = vmatpush2.msra.mxu0 0.0
        %504 = vmatprep.mubr.f32.mxu0 0.0
        %505 = vmatmul.mubr.f32.gmra.mxu0 %v357
        %v506 = vpop.f32.mrf.mxu0
        %v507 = vadd.f32 0.0, %v506
        %v508 = vpop.f32.mrf.mxu0
        %509 = vmatprep.mubr.f32.mxu0 0.0
        %510 = vmatmul.mubr.f32.gmra.mxu0 %v360
        %v511 = vpop.f32.mrf.mxu0
        %v512 = vadd.f32 0.0, %v511
        %v513 = vpop.f32.mrf.mxu0
        %514 = vmatprep.mubr.f32.mxu0 0.0
        %515 = vmatmul.mubr.f32.gmra.mxu0 %v363
        %v516 = vpop.f32.mrf.mxu0
        %v517 = vadd.f32 0.0, %v516
        %v518 = vpop.f32.mrf.mxu0
        %519 = vmatprep.mubr.f32.mxu0 0.0
        %520 = vmatmul.mubr.f32.gmra.mxu0 %v366
        %v521 = vpop.f32.mrf.mxu0
        %v522 = vadd.f32 0.0, %v521
        %v523 = vpop.f32.mrf.mxu0
        %524 = vmatprep.mubr.f32.mxu0 0.0
        %525 = vmatmul.mubr.f32.gmra.mxu0 %v369
        %v526 = vpop.f32.mrf.mxu0
        %v527 = vadd.f32 0.0, %v526
        %v528 = vpop.f32.mrf.mxu0
        %529 = vmatprep.mubr.f32.mxu0 0.0
        %530 = vmatmul.mubr.f32.gmra.mxu0 %v372
        %v531 = vpop.f32.mrf.mxu0
        %v532 = vadd.f32 0.0, %v531
        %v533 = vpop.f32.mrf.mxu0
        %534 = vmatprep.mubr.f32.mxu0 0.0
        %535 = vmatmul.mubr.f32.gmra.mxu0 %v375
        %v536 = vpop.f32.mrf.mxu0
        %v537 = vadd.f32 0.0, %v536
        %v538 = vpop.f32.mrf.mxu0
        %539 = vmatprep.mubr.f32.mxu0 0.0
        %540 = vmatmul.mubr.f32.gmra.mxu0 %v378
        %v541 = vpop.f32.mrf.mxu0
        %v542 = vadd.f32 0.0, %v541
        %v543 = vpop.f32.mrf.mxu0
        %544 = vmatprep.mubr.f32.mxu0 0.0
        %545 = vmatmul.mubr.f32.gmra.mxu0 %v381
        %v546 = vpop.f32.mrf.mxu0
        %v547 = vadd.f32 0.0, %v546
        %v548 = vpop.f32.mrf.mxu0
        %549 = vmatprep.mubr.f32.mxu0 0.0
        %550 = vmatmul.mubr.f32.gmra.mxu0 %v384
        %v551 = vpop.f32.mrf.mxu0
        %v552 = vadd.f32 0.0, %v551
        %v553 = vpop.f32.mrf.mxu0
        %554 = vmatprep.mubr.f32.mxu0 0.0
        %555 = vmatmul.mubr.f32.gmra.mxu0 %v387
        %v556 = vpop.f32.mrf.mxu0
        %v557 = vadd.f32 0.0, %v556
        %v558 = vpop.f32.mrf.mxu0
        %559 = vmatprep.mubr.f32.mxu0 0.0
        %560 = vmatmul.mubr.f32.gmra.mxu0 %v390
        %v561 = vpop.f32.mrf.mxu0
        %v562 = vadd.f32 0.0, %v561
        %v563 = vpop.f32.mrf.mxu0
        %564 = vmatprep.mubr.f32.mxu0 0.0
        %565 = vmatmul.mubr.f32.gmra.mxu0 %v393
        %v566 = vpop.f32.mrf.mxu0
        %v567 = vadd.f32 0.0, %v566
        %v568 = vpop.f32.mrf.mxu0
        %569 = vmatprep.mubr.f32.mxu0 0.0
        %570 = vmatmul.mubr.f32.gmra.mxu0 %v396
        %v571 = vpop.f32.mrf.mxu0
        %v572 = vadd.f32 0.0, %v571
        %v573 = vpop.f32.mrf.mxu0
        %574 = vmatprep.mubr.f32.mxu0 0.0
        %575 = vmatmul.mubr.f32.gmra.mxu0 %v399
        %v576 = vpop.f32.mrf.mxu0
        %v577 = vadd.f32 0.0, %v576
        %v578 = vpop.f32.mrf.mxu0
        %579 = vmatprep.mubr.f32.mxu0 0.0
        %580 = vmatmul.mubr.f32.gmra.mxu0 %v402
        %v581 = vpop.f32.mrf.mxu0
        %v582 = vadd.f32 0.0, %v581
        %v583 = vpop.f32.mrf.mxu0
        %584 = vmatprep.mubr.f32.mxu0 0.0
        %585 = vmatmul.mubr.f32.gmra.mxu0 %v405
        %v586 = vpop.f32.mrf.mxu0
        %v587 = vadd.f32 0.0, %v586
        %v588 = vpop.f32.mrf.mxu0
        %589 = vmatprep.mubr.f32.mxu0 0.0
        %590 = vmatmul.mubr.f32.gmra.mxu0 %v408
        %v591 = vpop.f32.mrf.mxu0
        %v592 = vadd.f32 0.0, %v591
        %v593 = vpop.f32.mrf.mxu0
        %594 = vmatprep.mubr.f32.mxu0 0.0
        %595 = vmatmul.mubr.f32.gmra.mxu0 %v411
        %v596 = vpop.f32.mrf.mxu0
        %v597 = vadd.f32 0.0, %v596
        %v598 = vpop.f32.mrf.mxu0
        %599 = vmatprep.mubr.f32.mxu0 0.0
        %600 = vmatmul.mubr.f32.gmra.mxu0 %v414
        %v601 = vpop.f32.mrf.mxu0
        %v602 = vadd.f32 0.0, %v601
        %v603 = vpop.f32.mrf.mxu0
        %604 = vmatprep.mubr.f32.mxu0 0.0
        %605 = vmatmul.mubr.f32.gmra.mxu0 %v417
        %v606 = vpop.f32.mrf.mxu0
        %v607 = vadd.f32 0.0, %v606
        %v608 = vpop.f32.mrf.mxu0
        %609 = vmatprep.mubr.f32.mxu0 0.0
        %610 = vmatmul.mubr.f32.gmra.mxu0 %v420
        %v611 = vpop.f32.mrf.mxu0
        %v612 = vadd.f32 0.0, %v611
        %v613 = vpop.f32.mrf.mxu0
        %614 = vmatprep.mubr.f32.mxu0 0.0
        %615 = vmatmul.mubr.f32.gmra.mxu0 %v423
        %v616 = vpop.f32.mrf.mxu0
        %v617 = vadd.f32 0.0, %v616
        %v618 = vpop.f32.mrf.mxu0
        %619 = vmatprep.mubr.f32.mxu0 0.0
        %620 = vmatmul.mubr.f32.gmra.mxu0 %v426
        %v621 = vpop.f32.mrf.mxu0
        %v622 = vadd.f32 0.0, %v621
        %v623 = vpop.f32.mrf.mxu0
        %624 = vmatprep.mubr.f32.mxu0 0.0
        %625 = vmatmul.mubr.f32.gmra.mxu0 %v429
        %v626 = vpop.f32.mrf.mxu0
        %v627 = vadd.f32 0.0, %v626
        %v628 = vpop.f32.mrf.mxu0
        %629 = vmatprep.mubr.f32.mxu0 0.0
        %630 = vmatmul.mubr.f32.gmra.mxu0 %v432
        %v631 = vpop.f32.mrf.mxu0
        %v632 = vadd.f32 0.0, %v631
        %v633 = vpop.f32.mrf.mxu0
        %634 = vmatprep.mubr.f32.mxu0 0.0
        %635 = vmatmul.mubr.f32.gmra.mxu0 %v435
        %v636 = vpop.f32.mrf.mxu0
        %v637 = vadd.f32 0.0, %v636
        %v638 = vpop.f32.mrf.mxu0
        %639 = vmatprep.mubr.f32.mxu0 0.0
        %640 = vmatmul.mubr.f32.gmra.mxu0 %v438
        %v641 = vpop.f32.mrf.mxu0
        %v642 = vadd.f32 0.0, %v641
        %v643 = vpop.f32.mrf.mxu0
        %644 = vdwg.mxu0
        %vm645 = vcmask 64512
        %v646 = vsel %vm645, %v507, -inf
        %v647 = vsel %vm645, %v542, -inf
        %v648 = vmax.f32 %v646, %v647
        %v649 = vsel %vm645, %v577, -inf
        %v650 = vmax.f32 %v648, %v649
        %v651 = vsel %vm645, %v612, -inf
        %v652 = vmax.f32 %v650, %v651
        %v653 = vsel %vm645, %v512, -inf
        %v654 = vsel %vm645, %v547, -inf
        %v655 = vmax.f32 %v653, %v654
        %v656 = vsel %vm645, %v582, -inf
        %v657 = vmax.f32 %v655, %v656
        %v658 = vsel %vm645, %v617, -inf
        %v659 = vmax.f32 %v657, %v658
        %v660 = vsel %vm645, %v517, -inf
        %v661 = vsel %vm645, %v552, -inf
        %v662 = vmax.f32 %v660, %v661
        %v663 = vsel %vm645, %v587, -inf
        %v664 = vmax.f32 %v662, %v663
        %v665 = vsel %vm645, %v622, -inf
        %v666 = vmax.f32 %v664, %v665
        %v667 = vsel %vm645, %v522, -inf
        %v668 = vsel %vm645, %v557, -inf
        %v669 = vmax.f32 %v667, %v668
        %v670 = vsel %vm645, %v592, -inf
        %v671 = vmax.f32 %v669, %v670
        %v672 = vsel %vm645, %v627, -inf
        %v673 = vmax.f32 %v671, %v672
        %v674 = vsel %vm645, %v527, -inf
        %v675 = vsel %vm645, %v562, -inf
        %v676 = vmax.f32 %v674, %v675
        %v677 = vsel %vm645, %v597, -inf
        %v678 = vmax.f32 %v676, %v677
        %v679 = vsel %vm645, %v632, -inf
        %v680 = vmax.f32 %v678, %v679
        %v681 = vsel %vm645, %v532, -inf
        %v682 = vsel %vm645, %v567, -inf
        %v683 = vmax.f32 %v681, %v682
        %v684 = vsel %vm645, %v602, -inf
        %v685 = vmax.f32 %v683, %v684
        %v686 = vsel %vm645, %v637, -inf
        %v687 = vmax.f32 %v685, %v686
        %v688 = vsel %vm645, %v537, -inf
        %v689 = vsel %vm645, %v572, -inf
        %v690 = vmax.f32 %v688, %v689
        %v691 = vsel %vm645, %v607, -inf
        %v692 = vmax.f32 %v690, %v691
        %v693 = vsel %vm645, %v642, -inf
        %v694 = vmax.f32 %v692, %v693
        %v695 = vld [vmem:[%s2] sm:$0x1]
        %v697 = vlaneseq
        %v698 = vshrl.u32 %v697, 7
        %v699 = vsub.s32 0, %v698
        %v700 = vrot.slane %v695, %v699
        %v702 = vadd.f32 %v652, %v700
        %v703 = vadd.f32 %v659, %v700
        %v704 = vadd.f32 %v666, %v700
        %v705 = vadd.f32 %v673, %v700
        %v706 = vadd.f32 %v680, %v700
        %v707 = vadd.f32 %v687, %v700
        %v708 = vadd.f32 %v694, %v700
        %v709 = vmax.f32 %v702, 0.0
        %v710 = vmax.f32 %v703, 0.0
        %v711 = vmax.f32 %v704, 0.0
        %v712 = vmax.f32 %v705, 0.0
        %v713 = vmax.f32 %v706, 0.0
        %v714 = vmax.f32 %v707, 0.0
        %v715 = vmax.f32 %v708, 0.0
        %716 = vst.msk [vmem:[%s315] sm:$0xff] %vm645, %v709
        %717 = vst.msk [vmem:[%s315 + $0x8] sm:$0xff] %vm645, %v710
        %718 = vst.msk [vmem:[%s315 + $0x10] sm:$0xff] %vm645, %v711
        %719 = vst.msk [vmem:[%s315 + $0x18] sm:$0xff] %vm645, %v712
        %720 = vst.msk [vmem:[%s315 + $0x20] sm:$0xff] %vm645, %v713
        %721 = vst.msk [vmem:[%s315 + $0x28] sm:$0xff] %vm645, %v714
        %722 = vst.msk [vmem:[%s315 + $0x30] sm:$0xff] %vm645, %v715
        %s723 = smul.u32 7, %s14
        %p724 = scmp.lt.s32.totalorder %s723, 48
        %s725 = scalar_select %p724, %s723, 48
        %s726 = smul.addr %s725, 8
        %s727 = scalar_lea.vmem %s3, %s726
        // Predicated region
        $region71: #{lenet_forward.3} parent=65 // pred_check
          %p728 = pneg %p100
        $region72: #{lenet_forward.3} parent=65 // pred_check_branch
          %730 = sbr.rel (%p728) target = $region74
        $region73: #{lenet_forward.3} parent=65 // pred_region
          %s731 = smul.u32 7, %s14
        $region74: #{lenet_forward.3} parent=65 // pred_fallthru
          _
      $region66: #{lenet_forward.3} parent=5 // pred_fallthru
        _
      %p732 = scmp.le.s32.totalorder 2, %s9
      // Predicated region
      $region75: #{lenet_forward.3} parent=5 // pred_check
        %p733 = pneg %p732
      $region76: #{lenet_forward.3} parent=5 // pred_check_branch
        %735 = sbr.rel (%p733) target = $region78
      $region77: #{lenet_forward.3} parent=5 // pred_region
        %s736 = ssub.s32 %s9, 2
        // Predicated region
        $region79: #{lenet_forward.3} parent=77 // pred_check
          %p737 = pneg %p106
        $region80: #{lenet_forward.3} parent=77 // pred_check_branch
          %739 = sbr.rel (%p737) target = $region82
        $region81: #{lenet_forward.3} parent=77 // pred_region
          %s740 = smul.u32 7, %s15
          %p741 = scmp.lt.s32.totalorder %s740, 48
          %s742 = scalar_select %p741, %s740, 48
          %s743 = smul.addr %s742, 8
          %s744 = scalar_lea.vmem %s3, %s743
        $region82: #{lenet_forward.3} parent=77 // pred_fallthru
          _
      $region78: #{lenet_forward.3} parent=5 // pred_fallthru
        _
    $region6: #{lenet_forward.3} parent=1 // loop_footer
      %s13 = sadd.s32 1, %s9
    $region7: #{lenet_forward.3} parent=1 // loop_footer_branch
      %8 = sbr.rel target = $region3
    $region8: #{lenet_forward.3} parent=1 // loop_exit
      _

// kernel: lenet_forward.4
$region0: #{lenet_forward.4}
  #allocation0 [shape = 'u32[]', space=smem, size = 0x4, offset = 0x4, fixed_abs, tag = 'smem constant byte address 0x4 - core index']
  #allocation1 [shape = 'u32[144,128]{1,0:T(1,128)}', space=vmem, size = 0x12000, scoped, tag = 'internal scratch']
  %s0 = inlined_call_operand.vmem [shape: f32[4,50,200], index: 0, kind: input, shape index: {}]
  %s1 = inlined_call_operand.vmem [shape: f32[200,16], index: 1, kind: input, shape index: {}]
  %s2 = inlined_call_operand.vmem [shape: f32[1,16], index: 2, kind: input, shape index: {}]
  %s3 = inlined_call_operand.vmem [shape: f32[50,16], index: 3, kind: output, shape index: {}]
  %s4 = sld [smem:[#allocation0]]
  $region22: #{lenet_forward.4} parent=0
    _
  %s6 = ssub.s32 1, %s4
  %s7 = scalar_select 0, %s6, %s4
  // Predicated region
  $region2: #{lenet_forward.4} parent=0 // pred_check
    _
  $region3: #{lenet_forward.4} parent=0 // pred_check_branch
    %9 = sbr.rel (0) target = $region5
  $region4: #{lenet_forward.4} parent=0 // pred_region
    _
  $region5: #{lenet_forward.4} parent=0 // pred_fallthru
    _
  // Predicated region
  $region6: #{lenet_forward.4} parent=0 // pred_check
    _
  $region7: #{lenet_forward.4} parent=0 // pred_check_branch
    %11 = sbr.rel (0) target = $region9
  $region8: #{lenet_forward.4} parent=0 // pred_region
    _
  $region9: #{lenet_forward.4} parent=0 // pred_fallthru
    _
  // Predicated region
  $region10: #{lenet_forward.4} parent=0 // pred_check
    _
  $region11: #{lenet_forward.4} parent=0 // pred_check_branch
    %13 = sbr.rel (0) target = $region13
  $region12: #{lenet_forward.4} parent=0 // pred_region
    _
  $region13: #{lenet_forward.4} parent=0 // pred_fallthru
    _
  %v14 = vld [vmem:[%s1] sm:$0xff]
  %v15 = vld [vmem:[%s1 + $0x8] sm:$0xff]
  %v16 = vld [vmem:[%s1 + $0x10] sm:$0xff]
  %v17 = vld [vmem:[%s1 + $0x18] sm:$0xff]
  %v18 = vld [vmem:[%s1 + $0x20] sm:$0xff]
  %v19 = vld [vmem:[%s1 + $0x28] sm:$0xff]
  %v20 = vld [vmem:[%s1 + $0x30] sm:$0xff]
  %v21 = vld [vmem:[%s1 + $0x38] sm:$0xff]
  %v22 = vld [vmem:[%s1 + $0x40] sm:$0xff]
  %v23 = vld [vmem:[%s1 + $0x48] sm:$0xff]
  %v24 = vld [vmem:[%s1 + $0x50] sm:$0xff]
  %v25 = vld [vmem:[%s1 + $0x58] sm:$0xff]
  %v26 = vld [vmem:[%s1 + $0x60] sm:$0xff]
  %v27 = vld [vmem:[%s1 + $0x68] sm:$0xff]
  %v28 = vld [vmem:[%s1 + $0x70] sm:$0xff]
  %v29 = vld [vmem:[%s1 + $0x78] sm:$0xff]
  %v30 = vld [vmem:[%s1 + $0x80] sm:$0xff]
  %v31 = vld [vmem:[%s1 + $0x88] sm:$0xff]
  %v32 = vld [vmem:[%s1 + $0x90] sm:$0xff]
  %v33 = vld [vmem:[%s1 + $0x98] sm:$0xff]
  %v34 = vld [vmem:[%s1 + $0xa0] sm:$0xff]
  %v35 = vld [vmem:[%s1 + $0xa8] sm:$0xff]
  %v36 = vld [vmem:[%s1 + $0xb0] sm:$0xff]
  %v37 = vld [vmem:[%s1 + $0xb8] sm:$0xff]
  %v38 = vld [vmem:[%s1 + $0xc0] sm:$0xff]
  %v39 = vld [vmem:[%s0] sm:$0xff]
  %v40 = vld [vmem:[%s0 + $0x8] sm:$0xff]
  %v41 = vld [vmem:[%s0 + $0x10] sm:$0xff]
  %v42 = vld [vmem:[%s0 + $0x18] sm:$0xff]
  %v43 = vld [vmem:[%s0 + $0x20] sm:$0xff]
  %v44 = vld [vmem:[%s0 + $0x28] sm:$0xff]
  %v45 = vld [vmem:[%s0 + $0x30] sm:$0xff]
  %v46 = vld [vmem:[%s0 + $0x38] sm:$0xff]
  %v47 = vld [vmem:[%s0 + $0x40] sm:$0xff]
  %v48 = vld [vmem:[%s0 + $0x48] sm:$0xff]
  %v49 = vld [vmem:[%s0 + $0x50] sm:$0xff]
  %v50 = vld [vmem:[%s0 + $0x58] sm:$0xff]
  %v51 = vld [vmem:[%s0 + $0x60] sm:$0x3]
  %v52 = vld [vmem:[%s0 + $0x68] sm:$0x3]
  %vm53 = vcmask 588800
  %v55 = vsel %vm53, %v40, 0
  %v58 = vsel %vm53, %v42, 0
  %v61 = vsel %vm53, %v44, 0
  %v64 = vsel %vm53, %v46, 0
  %v67 = vsel %vm53, %v48, 0
  %v70 = vsel %vm53, %v50, 0
  %v73 = vsel %vm53, %v52, 0
  %75 = vmatprep.subr.mxu0 0.0
  %76 = vmatpush1.msra.mxu0 %v29
  %77 = vmatprep.subr.mxu0 0.0
  %78 = vmatpush1.msra.mxu0 %v28
  %79 = vmatprep.subr.mxu0 0.0
  %80 = vmatpush1.msra.mxu0 %v27
  %81 = vmatprep.subr.mxu0 0.0
  %82 = vmatpush1.msra.mxu0 %v26
  %83 = vmatprep.subr.mxu0 0.0
  %84 = vmatpush1.msra.mxu0 %v25
  %85 = vmatprep.subr.mxu0 0.0
  %86 = vmatpush1.msra.mxu0 %v24
  %87 = vmatprep.subr.mxu0 0.0
  %88 = vmatpush1.msra.mxu0 %v23
  %89 = vmatprep.subr.mxu0 0.0
  %90 = vmatpush1.msra.mxu0 %v22
  %91 = vmatprep.subr.mxu0 0.0
  %92 = vmatpush1.msra.mxu0 %v21
  %93 = vmatprep.subr.mxu0 0.0
  %94 = vmatpush1.msra.mxu0 %v20
  %95 = vmatprep.subr.mxu0 0.0
  %96 = vmatpush1.msra.mxu0 %v19
  %97 = vmatprep.subr.mxu0 0.0
  %98 = vmatpush1.msra.mxu0 %v18
  %99 = vmatprep.subr.mxu0 0.0
  %100 = vmatpush1.msra.mxu0 %v17
  %101 = vmatprep.subr.mxu0 0.0
  %102 = vmatpush1.msra.mxu0 %v16
  %103 = vmatprep.subr.mxu0 0.0
  %104 = vmatpush1.msra.mxu0 %v15
  %105 = vmatprep.subr.mxu0 0.0
  %106 = vmatpush1.msra.mxu0 %v14
  %107 = vmatprep.subr.mxu0 0.0
  %108 = vmatpush2.msra.mxu0 0.0
  %109 = vmatprep.subr.mxu0 0.0
  %110 = vmatpush2.msra.mxu0 0.0
  %111 = vmatprep.subr.mxu0 0.0
  %112 = vmatpush2.msra.mxu0 0.0
  %113 = vmatprep.subr.mxu0 0.0
  %114 = vmatpush2.msra.mxu0 0.0
  %115 = vmatprep.subr.mxu0 0.0
  %116 = vmatpush2.msra.mxu0 0.0
  %117 = vmatprep.subr.mxu0 0.0
  %118 = vmatpush2.msra.mxu0 0.0
  %119 = vmatprep.subr.mxu0 0.0
  %120 = vmatpush2.msra.mxu0 0.0
  %121 = vmatprep.subr.mxu0 0.0
  %122 = vmatpush2.msra.mxu0 %v38
  %123 = vmatprep.subr.mxu0 0.0
  %124 = vmatpush2.msra.mxu0 %v37
  %125 = vmatprep.subr.mxu0 0.0
  %126 = vmatpush2.msra.mxu0 %v36
  %127 = vmatprep.subr.mxu0 0.0
  %128 = vmatpush2.msra.mxu0 %v35
  %129 = vmatprep.subr.mxu0 0.0
  %130 = vmatpush2.msra.mxu0 %v34
  %131 = vmatprep.subr.mxu0 0.0
  %132 = vmatpush2.msra.mxu0 %v33
  %133 = vmatprep.subr.mxu0 0.0
  %134 = vmatpush2.msra.mxu0 %v32
  %135 = vmatprep.subr.mxu0 0.0
  %136 = vmatpush2.msra.mxu0 %v31
  %137 = vmatprep.subr.mxu0 0.0
  %138 = vmatpush2.msra.mxu0 %v30
  %139 = vmatprep.mubr.f32.mxu0 %v55
  %140 = vmatmul.mubr.f32.gmra.mxu0 %v39
  %v141 = vpop.f32.mrf.mxu0
  %v142 = vadd.f32 0.0, %v141
  %v143 = vpop.f32.mrf.mxu0
  %144 = vmatprep.mubr.f32.mxu0 %v58
  %145 = vmatmul.mubr.f32.gmra.mxu0 %v41
  %v146 = vpop.f32.mrf.mxu0
  %v147 = vadd.f32 0.0, %v146
  %v148 = vpop.f32.mrf.mxu0
  %149 = vmatprep.mubr.f32.mxu0 %v61
  %150 = vmatmul.mubr.f32.gmra.mxu0 %v43
  %v151 = vpop.f32.mrf.mxu0
  %v152 = vadd.f32 0.0, %v151
  %v153 = vpop.f32.mrf.mxu0
  %154 = vmatprep.mubr.f32.mxu0 %v64
  %155 = vmatmul.mubr.f32.gmra.mxu0 %v45
  %v156 = vpop.f32.mrf.mxu0
  %v157 = vadd.f32 0.0, %v156
  %v158 = vpop.f32.mrf.mxu0
  %159 = vmatprep.mubr.f32.mxu0 %v67
  %160 = vmatmul.mubr.f32.gmra.mxu0 %v47
  %v161 = vpop.f32.mrf.mxu0
  %v162 = vadd.f32 0.0, %v161
  %v163 = vpop.f32.mrf.mxu0
  %164 = vmatprep.mubr.f32.mxu0 %v70
  %165 = vmatmul.mubr.f32.gmra.mxu0 %v49
  %v166 = vpop.f32.mrf.mxu0
  %v167 = vadd.f32 0.0, %v166
  %v168 = vpop.f32.mrf.mxu0
  %169 = vmatprep.mubr.f32.mxu0 %v73
  %170 = vmatmul.mubr.f32.gmra.mxu0 %v51
  %v171 = vpop.f32.mrf.mxu0
  %v172 = vadd.f32 0.0, %v171
  %v173 = vpop.f32.mrf.mxu0
  %174 = vdwg.mxu0
  %s175 = scalar_lea.vmem %s0, 112
  %v176 = vld [vmem:[%s175] sm:$0xff]
  %v177 = vld [vmem:[%s175 + $0x8] sm:$0xff]
  %v178 = vld [vmem:[%s175 + $0x10] sm:$0xff]
  %v179 = vld [vmem:[%s175 + $0x18] sm:$0xff]
  %v180 = vld [vmem:[%s175 + $0x20] sm:$0xff]
  %v181 = vld [vmem:[%s175 + $0x28] sm:$0xff]
  %v182 = vld [vmem:[%s175 + $0x30] sm:$0xff]
  %v183 = vld [vmem:[%s175 + $0x38] sm:$0xff]
  %v184 = vld [vmem:[%s175 + $0x40] sm:$0xff]
  %v185 = vld [vmem:[%s175 + $0x48] sm:$0xff]
  %v186 = vld [vmem:[%s175 + $0x50] sm:$0xff]
  %v187 = vld [vmem:[%s175 + $0x58] sm:$0xff]
  %v188 = vld [vmem:[%s175 + $0x60] sm:$0x3]
  %v189 = vld [vmem:[%s175 + $0x68] sm:$0x3]
  %v191 = vsel %vm53, %v177, 0
  %v194 = vsel %vm53, %v179, 0
  %v197 = vsel %vm53, %v181, 0
  %v200 = vsel %vm53, %v183, 0
  %v203 = vsel %vm53, %v185, 0
  %v206 = vsel %vm53, %v187, 0
  %v209 = vsel %vm53, %v189, 0
  %211 = vmatprep.subr.mxu0 0.0
  %212 = vmatpush1.msra.mxu0 %v29
  %213 = vmatprep.subr.mxu0 0.0
  %214 = vmatpush1.msra.mxu0 %v28
  %215 = vmatprep.subr.mxu0 0.0
  %216 = vmatpush1.msra.mxu0 %v27
  %217 = vmatprep.subr.mxu0 0.0
  %218 = vmatpush1.msra.mxu0 %v26
  %219 = vmatprep.subr.mxu0 0.0
  %220 = vmatpush1.msra.mxu0 %v25
  %221 = vmatprep.subr.mxu0 0.0
  %222 = vmatpush1.msra.mxu0 %v24
  %223 = vmatprep.subr.mxu0 0.0
  %224 = vmatpush1.msra.mxu0 %v23
  %225 = vmatprep.subr.mxu0 0.0
  %226 = vmatpush1.msra.mxu0 %v22
  %227 = vmatprep.subr.mxu0 0.0
  %228 = vmatpush1.msra.mxu0 %v21
  %229 = vmatprep.subr.mxu0 0.0
  %230 = vmatpush1.msra.mxu0 %v20
  %231 = vmatprep.subr.mxu0 0.0
  %232 = vmatpush1.msra.mxu0 %v19
  %233 = vmatprep.subr.mxu0 0.0
  %234 = vmatpush1.msra.mxu0 %v18
  %235 = vmatprep.subr.mxu0 0.0
  %236 = vmatpush1.msra.mxu0 %v17
  %237 = vmatprep.subr.mxu0 0.0
  %238 = vmatpush1.msra.mxu0 %v16
  %239 = vmatprep.subr.mxu0 0.0
  %240 = vmatpush1.msra.mxu0 %v15
  %241 = vmatprep.subr.mxu0 0.0
  %242 = vmatpush1.msra.mxu0 %v14
  %243 = vmatprep.subr.mxu0 0.0
  %244 = vmatpush2.msra.mxu0 0.0
  %245 = vmatprep.subr.mxu0 0.0
  %246 = vmatpush2.msra.mxu0 0.0
  %247 = vmatprep.subr.mxu0 0.0
  %248 = vmatpush2.msra.mxu0 0.0
  %249 = vmatprep.subr.mxu0 0.0
  %250 = vmatpush2.msra.mxu0 0.0
  %251 = vmatprep.subr.mxu0 0.0
  %252 = vmatpush2.msra.mxu0 0.0
  %253 = vmatprep.subr.mxu0 0.0
  %254 = vmatpush2.msra.mxu0 0.0
  %255 = vmatprep.subr.mxu0 0.0
  %256 = vmatpush2.msra.mxu0 0.0
  %257 = vmatprep.subr.mxu0 0.0
  %258 = vmatpush2.msra.mxu0 %v38
  %259 = vmatprep.subr.mxu0 0.0
  %260 = vmatpush2.msra.mxu0 %v37
  %261 = vmatprep.subr.mxu0 0.0
  %262 = vmatpush2.msra.mxu0 %v36
  %263 = vmatprep.subr.mxu0 0.0
  %264 = vmatpush2.msra.mxu0 %v35
  %265 = vmatprep.subr.mxu0 0.0
  %266 = vmatpush2.msra.mxu0 %v34
  %267 = vmatprep.subr.mxu0 0.0
  %268 = vmatpush2.msra.mxu0 %v33
  %269 = vmatprep.subr.mxu0 0.0
  %270 = vmatpush2.msra.mxu0 %v32
  %271 = vmatprep.subr.mxu0 0.0
  %272 = vmatpush2.msra.mxu0 %v31
  %273 = vmatprep.subr.mxu0 0.0
  %274 = vmatpush2.msra.mxu0 %v30
  %275 = vmatprep.mubr.f32.mxu0 %v191
  %276 = vmatmul.mubr.f32.gmra.mxu0 %v176
  %v277 = vpop.f32.mrf.mxu0
  %v278 = vadd.f32 0.0, %v277
  %v279 = vpop.f32.mrf.mxu0
  %280 = vmatprep.mubr.f32.mxu0 %v194
  %281 = vmatmul.mubr.f32.gmra.mxu0 %v178
  %v282 = vpop.f32.mrf.mxu0
  %v283 = vadd.f32 0.0, %v282
  %v284 = vpop.f32.mrf.mxu0
  %285 = vmatprep.mubr.f32.mxu0 %v197
  %286 = vmatmul.mubr.f32.gmra.mxu0 %v180
  %v287 = vpop.f32.mrf.mxu0
  %v288 = vadd.f32 0.0, %v287
  %v289 = vpop.f32.mrf.mxu0
  %290 = vmatprep.mubr.f32.mxu0 %v200
  %291 = vmatmul.mubr.f32.gmra.mxu0 %v182
  %v292 = vpop.f32.mrf.mxu0
  %v293 = vadd.f32 0.0, %v292
  %v294 = vpop.f32.mrf.mxu0
  %295 = vmatprep.mubr.f32.mxu0 %v203
  %296 = vmatmul.mubr.f32.gmra.mxu0 %v184
  %v297 = vpop.f32.mrf.mxu0
  %v298 = vadd.f32 0.0, %v297
  %v299 = vpop.f32.mrf.mxu0
  %300 = vmatprep.mubr.f32.mxu0 %v206
  %301 = vmatmul.mubr.f32.gmra.mxu0 %v186
  %v302 = vpop.f32.mrf.mxu0
  %v303 = vadd.f32 0.0, %v302
  %v304 = vpop.f32.mrf.mxu0
  %305 = vmatprep.mubr.f32.mxu0 %v209
  %306 = vmatmul.mubr.f32.gmra.mxu0 %v188
  %v307 = vpop.f32.mrf.mxu0
  %v308 = vadd.f32 0.0, %v307
  %v309 = vpop.f32.mrf.mxu0
  %310 = vdwg.mxu0
  %v311 = vmax.f32 %v142, %v278
  %v312 = vmax.f32 %v147, %v283
  %v313 = vmax.f32 %v152, %v288
  %v314 = vmax.f32 %v157, %v293
  %v315 = vmax.f32 %v162, %v298
  %v316 = vmax.f32 %v167, %v303
  %v317 = vmax.f32 %v172, %v308
  %s318 = scalar_lea.vmem %s0, 224
  %v319 = vld [vmem:[%s318] sm:$0xff]
  %v320 = vld [vmem:[%s318 + $0x8] sm:$0xff]
  %v321 = vld [vmem:[%s318 + $0x10] sm:$0xff]
  %v322 = vld [vmem:[%s318 + $0x18] sm:$0xff]
  %v323 = vld [vmem:[%s318 + $0x20] sm:$0xff]
  %v324 = vld [vmem:[%s318 + $0x28] sm:$0xff]
  %v325 = vld [vmem:[%s318 + $0x30] sm:$0xff]
  %v326 = vld [vmem:[%s318 + $0x38] sm:$0xff]
  %v327 = vld [vmem:[%s318 + $0x40] sm:$0xff]
  %v328 = vld [vmem:[%s318 + $0x48] sm:$0xff]
  %v329 = vld [vmem:[%s318 + $0x50] sm:$0xff]
  %v330 = vld [vmem:[%s318 + $0x58] sm:$0xff]
  %v331 = vld [vmem:[%s318 + $0x60] sm:$0x3]
  %v332 = vld [vmem:[%s318 + $0x68] sm:$0x3]
  %v334 = vsel %vm53, %v320, 0
  %v337 = vsel %vm53, %v322, 0
  %v340 = vsel %vm53, %v324, 0
  %v343 = vsel %vm53, %v326, 0
  %v346 = vsel %vm53, %v328, 0
  %v349 = vsel %vm53, %v330, 0
  %v352 = vsel %vm53, %v332, 0
  %354 = vmatprep.subr.mxu0 0.0
  %355 = vmatpush1.msra.mxu0 %v29
  %356 = vmatprep.subr.mxu0 0.0
  %357 = vmatpush1.msra.mxu0 %v28
  %358 = vmatprep.subr.mxu0 0.0
  %359 = vmatpush1.msra.mxu0 %v27
  %360 = vmatprep.subr.mxu0 0.0
  %361 = vmatpush1.msra.mxu0 %v26
  %362 = vmatprep.subr.mxu0 0.0
  %363 = vmatpush1.msra.mxu0 %v25
  %364 = vmatprep.subr.mxu0 0.0
  %365 = vmatpush1.msra.mxu0 %v24
  %366 = vmatprep.subr.mxu0 0.0
  %367 = vmatpush1.msra.mxu0 %v23
  %368 = vmatprep.subr.mxu0 0.0
  %369 = vmatpush1.msra.mxu0 %v22
  %370 = vmatprep.subr.mxu0 0.0
  %371 = vmatpush1.msra.mxu0 %v21
  %372 = vmatprep.subr.mxu0 0.0
  %373 = vmatpush1.msra.mxu0 %v20
  %374 = vmatprep.subr.mxu0 0.0
  %375 = vmatpush1.msra.mxu0 %v19
  %376 = vmatprep.subr.mxu0 0.0
  %377 = vmatpush1.msra.mxu0 %v18
  %378 = vmatprep.subr.mxu0 0.0
  %379 = vmatpush1.msra.mxu0 %v17
  %380 = vmatprep.subr.mxu0 0.0
  %381 = vmatpush1.msra.mxu0 %v16
  %382 = vmatprep.subr.mxu0 0.0
  %383 = vmatpush1.msra.mxu0 %v15
  %384 = vmatprep.subr.mxu0 0.0
  %385 = vmatpush1.msra.mxu0 %v14
  %386 = vmatprep.subr.mxu0 0.0
  %387 = vmatpush2.msra.mxu0 0.0
  %388 = vmatprep.subr.mxu0 0.0
  %389 = vmatpush2.msra.mxu0 0.0
  %390 = vmatprep.subr.mxu0 0.0
  %391 = vmatpush2.msra.mxu0 0.0
  %392 = vmatprep.subr.mxu0 0.0
  %393 = vmatpush2.msra.mxu0 0.0
  %394 = vmatprep.subr.mxu0 0.0
  %395 = vmatpush2.msra.mxu0 0.0
  %396 = vmatprep.subr.mxu0 0.0
  %397 = vmatpush2.msra.mxu0 0.0
  %398 = vmatprep.subr.mxu0 0.0
  %399 = vmatpush2.msra.mxu0 0.0
  %400 = vmatprep.subr.mxu0 0.0
  %401 = vmatpush2.msra.mxu0 %v38
  %402 = vmatprep.subr.mxu0 0.0
  %403 = vmatpush2.msra.mxu0 %v37
  %404 = vmatprep.subr.mxu0 0.0
  %405 = vmatpush2.msra.mxu0 %v36
  %406 = vmatprep.subr.mxu0 0.0
  %407 = vmatpush2.msra.mxu0 %v35
  %408 = vmatprep.subr.mxu0 0.0
  %409 = vmatpush2.msra.mxu0 %v34
  %410 = vmatprep.subr.mxu0 0.0
  %411 = vmatpush2.msra.mxu0 %v33
  %412 = vmatprep.subr.mxu0 0.0
  %413 = vmatpush2.msra.mxu0 %v32
  %414 = vmatprep.subr.mxu0 0.0
  %415 = vmatpush2.msra.mxu0 %v31
  %416 = vmatprep.subr.mxu0 0.0
  %417 = vmatpush2.msra.mxu0 %v30
  %418 = vmatprep.mubr.f32.mxu0 %v334
  %419 = vmatmul.mubr.f32.gmra.mxu0 %v319
  %v420 = vpop.f32.mrf.mxu0
  %v421 = vadd.f32 0.0, %v420
  %v422 = vpop.f32.mrf.mxu0
  %423 = vmatprep.mubr.f32.mxu0 %v337
  %424 = vmatmul.mubr.f32.gmra.mxu0 %v321
  %v425 = vpop.f32.mrf.mxu0
  %v426 = vadd.f32 0.0, %v425
  %v427 = vpop.f32.mrf.mxu0
  %428 = vmatprep.mubr.f32.mxu0 %v340
  %429 = vmatmul.mubr.f32.gmra.mxu0 %v323
  %v430 = vpop.f32.mrf.mxu0
  %v431 = vadd.f32 0.0, %v430
  %v432 = vpop.f32.mrf.mxu0
  %433 = vmatprep.mubr.f32.mxu0 %v343
  %434 = vmatmul.mubr.f32.gmra.mxu0 %v325
  %v435 = vpop.f32.mrf.mxu0
  %v436 = vadd.f32 0.0, %v435
  %v437 = vpop.f32.mrf.mxu0
  %438 = vmatprep.mubr.f32.mxu0 %v346
  %439 = vmatmul.mubr.f32.gmra.mxu0 %v327
  %v440 = vpop.f32.mrf.mxu0
  %v441 = vadd.f32 0.0, %v440
  %v442 = vpop.f32.mrf.mxu0
  %443 = vmatprep.mubr.f32.mxu0 %v349
  %444 = vmatmul.mubr.f32.gmra.mxu0 %v329
  %v445 = vpop.f32.mrf.mxu0
  %v446 = vadd.f32 0.0, %v445
  %v447 = vpop.f32.mrf.mxu0
  %448 = vmatprep.mubr.f32.mxu0 %v352
  %449 = vmatmul.mubr.f32.gmra.mxu0 %v331
  %v450 = vpop.f32.mrf.mxu0
  %v451 = vadd.f32 0.0, %v450
  %v452 = vpop.f32.mrf.mxu0
  %453 = vdwg.mxu0
  %v454 = vmax.f32 %v311, %v421
  %v455 = vmax.f32 %v312, %v426
  %v456 = vmax.f32 %v313, %v431
  %v457 = vmax.f32 %v314, %v436
  %v458 = vmax.f32 %v315, %v441
  %v459 = vmax.f32 %v316, %v446
  %v460 = vmax.f32 %v317, %v451
  %s461 = scalar_lea.vmem %s0, 336
  %v462 = vld [vmem:[%s461] sm:$0xff]
  %v463 = vld [vmem:[%s461 + $0x8] sm:$0xff]
  %v464 = vld [vmem:[%s461 + $0x10] sm:$0xff]
  %v465 = vld [vmem:[%s461 + $0x18] sm:$0xff]
  %v466 = vld [vmem:[%s461 + $0x20] sm:$0xff]
  %v467 = vld [vmem:[%s461 + $0x28] sm:$0xff]
  %v468 = vld [vmem:[%s461 + $0x30] sm:$0xff]
  %v469 = vld [vmem:[%s461 + $0x38] sm:$0xff]
  %v470 = vld [vmem:[%s461 + $0x40] sm:$0xff]
  %v471 = vld [vmem:[%s461 + $0x48] sm:$0xff]
  %v472 = vld [vmem:[%s461 + $0x50] sm:$0xff]
  %v473 = vld [vmem:[%s461 + $0x58] sm:$0xff]
  %v474 = vld [vmem:[%s461 + $0x60] sm:$0x3]
  %v475 = vld [vmem:[%s461 + $0x68] sm:$0x3]
  %v477 = vsel %vm53, %v463, 0
  %v480 = vsel %vm53, %v465, 0
  %v483 = vsel %vm53, %v467, 0
  %v486 = vsel %vm53, %v469, 0
  %v489 = vsel %vm53, %v471, 0
  %v492 = vsel %vm53, %v473, 0
  %v495 = vsel %vm53, %v475, 0
  %497 = vmatprep.subr.mxu0 0.0
  %498 = vmatpush1.msra.mxu0 %v29
  %499 = vmatprep.subr.mxu0 0.0
  %500 = vmatpush1.msra.mxu0 %v28
  %501 = vmatprep.subr.mxu0 0.0
  %502 = vmatpush1.msra.mxu0 %v27
  %503 = vmatprep.subr.mxu0 0.0
  %504 = vmatpush1.msra.mxu0 %v26
  %505 = vmatprep.subr.mxu0 0.0
  %506 = vmatpush1.msra.mxu0 %v25
  %507 = vmatprep.subr.mxu0 0.0
  %508 = vmatpush1.msra.mxu0 %v24
  %509 = vmatprep.subr.mxu0 0.0
  %510 = vmatpush1.msra.mxu0 %v23
  %511 = vmatprep.subr.mxu0 0.0
  %512 = vmatpush1.msra.mxu0 %v22
  %513 = vmatprep.subr.mxu0 0.0
  %514 = vmatpush1.msra.mxu0 %v21
  %515 = vmatprep.subr.mxu0 0.0
  %516 = vmatpush1.msra.mxu0 %v20
  %517 = vmatprep.subr.mxu0 0.0
  %518 = vmatpush1.msra.mxu0 %v19
  %519 = vmatprep.subr.mxu0 0.0
  %520 = vmatpush1.msra.mxu0 %v18
  %521 = vmatprep.subr.mxu0 0.0
  %522 = vmatpush1.msra.mxu0 %v17
  %523 = vmatprep.subr.mxu0 0.0
  %524 = vmatpush1.msra.mxu0 %v16
  %525 = vmatprep.subr.mxu0 0.0
  %526 = vmatpush1.msra.mxu0 %v15
  %527 = vmatprep.subr.mxu0 0.0
  %528 = vmatpush1.msra.mxu0 %v14
  %529 = vmatprep.subr.mxu0 0.0
  %530 = vmatpush2.msra.mxu0 0.0
  %531 = vmatprep.subr.mxu0 0.0
  %532 = vmatpush2.msra.mxu0 0.0
  %533 = vmatprep.subr.mxu0 0.0
  %534 = vmatpush2.msra.mxu0 0.0
  %535 = vmatprep.subr.mxu0 0.0
  %536 = vmatpush2.msra.mxu0 0.0
  %537 = vmatprep.subr.mxu0 0.0
  %538 = vmatpush2.msra.mxu0 0.0
  %539 = vmatprep.subr.mxu0 0.0
  %540 = vmatpush2.msra.mxu0 0.0
  %541 = vmatprep.subr.mxu0 0.0
  %542 = vmatpush2.msra.mxu0 0.0
  %543 = vmatprep.subr.mxu0 0.0
  %544 = vmatpush2.msra.mxu0 %v38
  %545 = vmatprep.subr.mxu0 0.0
  %546 = vmatpush2.msra.mxu0 %v37
  %547 = vmatprep.subr.mxu0 0.0
  %548 = vmatpush2.msra.mxu0 %v36
  %549 = vmatprep.subr.mxu0 0.0
  %550 = vmatpush2.msra.mxu0 %v35
  %551 = vmatprep.subr.mxu0 0.0
  %552 = vmatpush2.msra.mxu0 %v34
  %553 = vmatprep.subr.mxu0 0.0
  %554 = vmatpush2.msra.mxu0 %v33
  %555 = vmatprep.subr.mxu0 0.0
  %556 = vmatpush2.msra.mxu0 %v32
  %557 = vmatprep.subr.mxu0 0.0
  %558 = vmatpush2.msra.mxu0 %v31
  %559 = vmatprep.subr.mxu0 0.0
  %560 = vmatpush2.msra.mxu0 %v30
  %561 = vmatprep.mubr.f32.mxu0 %v477
  %562 = vmatmul.mubr.f32.gmra.mxu0 %v462
  %v563 = vpop.f32.mrf.mxu0
  %v564 = vadd.f32 0.0, %v563
  %v565 = vpop.f32.mrf.mxu0
  %566 = vmatprep.mubr.f32.mxu0 %v480
  %567 = vmatmul.mubr.f32.gmra.mxu0 %v464
  %v568 = vpop.f32.mrf.mxu0
  %v569 = vadd.f32 0.0, %v568
  %v570 = vpop.f32.mrf.mxu0
  %571 = vmatprep.mubr.f32.mxu0 %v483
  %572 = vmatmul.mubr.f32.gmra.mxu0 %v466
  %v573 = vpop.f32.mrf.mxu0
  %v574 = vadd.f32 0.0, %v573
  %v575 = vpop.f32.mrf.mxu0
  %576 = vmatprep.mubr.f32.mxu0 %v486
  %577 = vmatmul.mubr.f32.gmra.mxu0 %v468
  %v578 = vpop.f32.mrf.mxu0
  %v579 = vadd.f32 0.0, %v578
  %v580 = vpop.f32.mrf.mxu0
  %581 = vmatprep.mubr.f32.mxu0 %v489
  %582 = vmatmul.mubr.f32.gmra.mxu0 %v470
  %v583 = vpop.f32.mrf.mxu0
  %v584 = vadd.f32 0.0, %v583
  %v585 = vpop.f32.mrf.mxu0
  %586 = vmatprep.mubr.f32.mxu0 %v492
  %587 = vmatmul.mubr.f32.gmra.mxu0 %v472
  %v588 = vpop.f32.mrf.mxu0
  %v589 = vadd.f32 0.0, %v588
  %v590 = vpop.f32.mrf.mxu0
  %591 = vmatprep.mubr.f32.mxu0 %v495
  %592 = vmatmul.mubr.f32.gmra.mxu0 %v474
  %v593 = vpop.f32.mrf.mxu0
  %v594 = vadd.f32 0.0, %v593
  %v595 = vpop.f32.mrf.mxu0
  %596 = vdwg.mxu0
  %v597 = vmax.f32 %v454, %v564
  %v598 = vmax.f32 %v455, %v569
  %v599 = vmax.f32 %v456, %v574
  %v600 = vmax.f32 %v457, %v579
  %v601 = vmax.f32 %v458, %v584
  %v602 = vmax.f32 %v459, %v589
  %v603 = vmax.f32 %v460, %v594
  %v604 = vld [vmem:[%s2] sm:$0x1]
  %v606 = vlaneseq
  %v607 = vshrl.u32 %v606, 7
  %v608 = vsub.s32 0, %v607
  %v609 = vrot.slane %v604, %v608
  %v611 = vadd.f32 %v597, %v609
  %v612 = vadd.f32 %v598, %v609
  %v613 = vadd.f32 %v599, %v609
  %v614 = vadd.f32 %v600, %v609
  %v615 = vadd.f32 %v601, %v609
  %v616 = vadd.f32 %v602, %v609
  %v617 = vadd.f32 %v603, %v609
  %v618 = vmax.f32 %v611, 0.0
  %v619 = vmax.f32 %v612, 0.0
  %v620 = vmax.f32 %v613, 0.0
  %v621 = vmax.f32 %v614, 0.0
  %v622 = vmax.f32 %v615, 0.0
  %v623 = vmax.f32 %v616, 0.0
  %v624 = vmax.f32 %v617, 0.0
  %vm625 = vcmask 130048
  %626 = vst.msk [vmem:[%s3] sm:$0xff] %vm625, %v618
  %627 = vst.msk [vmem:[%s3 + $0x8] sm:$0xff] %vm625, %v619
  %628 = vst.msk [vmem:[%s3 + $0x10] sm:$0xff] %vm625, %v620
  %629 = vst.msk [vmem:[%s3 + $0x18] sm:$0xff] %vm625, %v621
  %630 = vst.msk [vmem:[%s3 + $0x20] sm:$0xff] %vm625, %v622
  %631 = vst.msk [vmem:[%s3 + $0x28] sm:$0xff] %vm625, %v623
  %vm632 = vcmask 123904
  %633 = vst.msk [vmem:[%s3 + $0x30] sm:$0x3] %vm632, %v624
  // Predicated region
  $region14: #{lenet_forward.4} parent=0 // pred_check
    _
  $region15: #{lenet_forward.4} parent=0 // pred_check_branch
    %635 = sbr.rel (0) target = $region17
  $region16: #{lenet_forward.4} parent=0 // pred_region
    _
  $region17: #{lenet_forward.4} parent=0 // pred_fallthru
    _
  // Predicated region
  $region18: #{lenet_forward.4} parent=0 // pred_check
    _
  $region19: #{lenet_forward.4} parent=0 // pred_check_branch
    %637 = sbr.rel (0) target = $region21
  $region20: #{lenet_forward.4} parent=0 // pred_region
    _
  $region21: #{lenet_forward.4} parent=0 // pred_fallthru
    _

// kernel: lenet_forward.5
$region0: #{lenet_forward.5}
  #allocation0 [shape = 'u32[]', space=smem, size = 0x4, offset = 0x4, fixed_abs, tag = 'smem constant byte address 0x4 - core index']
  #allocation1 [shape = 'u32[144,128]{1,0:T(1,128)}', space=vmem, size = 0x12000, scoped, tag = 'internal scratch']
  %s0 = inlined_call_operand.vmem [shape: f32[2,400], index: 0, kind: input, shape index: {}]
  %s1 = inlined_call_operand.vmem [shape: f32[400,128], index: 1, kind: input, shape index: {}]
  %s2 = inlined_call_operand.vmem [shape: f32[1,128], index: 2, kind: input, shape index: {}]
  %s3 = inlined_call_operand.vmem [shape: f32[128,128], index: 3, kind: input, shape index: {}]
  %s4 = inlined_call_operand.vmem [shape: f32[1,128], index: 4, kind: input, shape index: {}]
  %s5 = inlined_call_operand.vmem [shape: f32[128,128], index: 5, kind: input, shape index: {}]
  %s6 = inlined_call_operand.vmem [shape: f32[1,128], index: 6, kind: input, shape index: {}]
  %s7 = inlined_call_operand.hbm [shape: f32[2,128], index: 7, kind: output, shape index: {}]
  %s8 = sld [smem:[#allocation0]]
  $region38: #{lenet_forward.5} parent=0
    _
  %s10 = ssub.s32 1, %s8
  %s11 = scalar_select 0, %s10, %s8
  $region1: #{lenet_forward.5} parent=0
    #allocation2 [shape = 'u8[1024]{0}', space=vmem, size = 0x400, scoped, tag = 'output window, operand 0, single buffered']
    #allocation3 [shape = 's32[1]{0}', space=sflag, size = 0x4, scoped, tag = 'scoped memory for lenet_forward.5']
    %12 = vsyncpa [#allocation3], 0
    // Predicated region
    $region2: #{lenet_forward.5} parent=1 // pred_check
      _
    $region3: #{lenet_forward.5} parent=1 // pred_check_branch
      %14 = sbr.rel (0) target = $region5
    $region4: #{lenet_forward.5} parent=1 // pred_region
      _
    $region5: #{lenet_forward.5} parent=1 // pred_fallthru
      _
    // Predicated region
    $region6: #{lenet_forward.5} parent=1 // pred_check
      _
    $region7: #{lenet_forward.5} parent=1 // pred_check_branch
      %16 = sbr.rel (0) target = $region9
    $region8: #{lenet_forward.5} parent=1 // pred_region
      _
    $region9: #{lenet_forward.5} parent=1 // pred_fallthru
      _
    // Predicated region
    $region10: #{lenet_forward.5} parent=1 // pred_check
      _
    $region11: #{lenet_forward.5} parent=1 // pred_check_branch
      %18 = sbr.rel (0) target = $region13
    $region12: #{lenet_forward.5} parent=1 // pred_region
      _
    $region13: #{lenet_forward.5} parent=1 // pred_fallthru
      _
    // Predicated region
    $region14: #{lenet_forward.5} parent=1 // pred_check
      _
    $region15: #{lenet_forward.5} parent=1 // pred_check_branch
      %20 = sbr.rel (0) target = $region17
    $region16: #{lenet_forward.5} parent=1 // pred_region
      _
    $region17: #{lenet_forward.5} parent=1 // pred_fallthru
      _
    // Predicated region
    $region18: #{lenet_forward.5} parent=1 // pred_check
      _
    $region19: #{lenet_forward.5} parent=1 // pred_check_branch
      %22 = sbr.rel (0) target = $region21
    $region20: #{lenet_forward.5} parent=1 // pred_region
      _
    $region21: #{lenet_forward.5} parent=1 // pred_fallthru
      _
    // Predicated region
    $region22: #{lenet_forward.5} parent=1 // pred_check
      _
    $region23: #{lenet_forward.5} parent=1 // pred_check_branch
      %24 = sbr.rel (0) target = $region25
    $region24: #{lenet_forward.5} parent=1 // pred_region
      _
    $region25: #{lenet_forward.5} parent=1 // pred_fallthru
      _
    // Predicated region
    $region26: #{lenet_forward.5} parent=1 // pred_check
      _
    $region27: #{lenet_forward.5} parent=1 // pred_check_branch
      %26 = sbr.rel (0) target = $region29
    $region28: #{lenet_forward.5} parent=1 // pred_region
      _
    $region29: #{lenet_forward.5} parent=1 // pred_fallthru
      _
    %v27 = vld [vmem:[%s0] sm:$0xff]
    %v28 = vld [vmem:[%s1] sm:$0xff]
    %v29 = vld [vmem:[%s1 + $0x8] sm:$0xff]
    %v30 = vld [vmem:[%s1 + $0x10] sm:$0xff]
    %v31 = vld [vmem:[%s1 + $0x18] sm:$0xff]
    %v32 = vld [vmem:[%s1 + $0x20] sm:$0xff]
    %v33 = vld [vmem:[%s1 + $0x28] sm:$0xff]
    %v34 = vld [vmem:[%s1 + $0x30] sm:$0xff]
    %v35 = vld [vmem:[%s1 + $0x38] sm:$0xff]
    %v36 = vld [vmem:[%s1 + $0x40] sm:$0xff]
    %v37 = vld [vmem:[%s1 + $0x48] sm:$0xff]
    %v38 = vld [vmem:[%s1 + $0x50] sm:$0xff]
    %v39 = vld [vmem:[%s1 + $0x58] sm:$0xff]
    %v40 = vld [vmem:[%s1 + $0x60] sm:$0xff]
    %v41 = vld [vmem:[%s1 + $0x68] sm:$0xff]
    %v42 = vld [vmem:[%s1 + $0x70] sm:$0xff]
    %v43 = vld [vmem:[%s1 + $0x78] sm:$0xff]
    %v44 = vld [vmem:[%s1 + $0x80] sm:$0xff]
    %v45 = vld [vmem:[%s1 + $0x88] sm:$0xff]
    %v46 = vld [vmem:[%s1 + $0x90] sm:$0xff]
    %v47 = vld [vmem:[%s1 + $0x98] sm:$0xff]
    %v48 = vld [vmem:[%s1 + $0xa0] sm:$0xff]
    %v49 = vld [vmem:[%s1 + $0xa8] sm:$0xff]
    %v50 = vld [vmem:[%s1 + $0xb0] sm:$0xff]
    %v51 = vld [vmem:[%s1 + $0xb8] sm:$0xff]
    %v52 = vld [vmem:[%s1 + $0xc0] sm:$0xff]
    %v53 = vld [vmem:[%s1 + $0xc8] sm:$0xff]
    %v54 = vld [vmem:[%s1 + $0xd0] sm:$0xff]
    %v55 = vld [vmem:[%s1 + $0xd8] sm:$0xff]
    %v56 = vld [vmem:[%s1 + $0xe0] sm:$0xff]
    %v57 = vld [vmem:[%s1 + $0xe8] sm:$0xff]
    %v58 = vld [vmem:[%s1 + $0xf0] sm:$0xff]
    %v59 = vld [vmem:[%s1 + $0xf8] sm:$0xff]
    %v60 = vld [vmem:[%s1 + $0x100] sm:$0xff]
    %v61 = vld [vmem:[%s1 + $0x108] sm:$0xff]
    %v62 = vld [vmem:[%s1 + $0x110] sm:$0xff]
    %v63 = vld [vmem:[%s1 + $0x118] sm:$0xff]
    %v64 = vld [vmem:[%s1 + $0x120] sm:$0xff]
    %v65 = vld [vmem:[%s1 + $0x128] sm:$0xff]
    %v66 = vld [vmem:[%s1 + $0x130] sm:$0xff]
    %v67 = vld [vmem:[%s1 + $0x138] sm:$0xff]
    %v68 = vld [vmem:[%s1 + $0x140] sm:$0xff]
    %v69 = vld [vmem:[%s1 + $0x148] sm:$0xff]
    %v70 = vld [vmem:[%s1 + $0x150] sm:$0xff]
    %v71 = vld [vmem:[%s1 + $0x158] sm:$0xff]
    %v72 = vld [vmem:[%s1 + $0x160] sm:$0xff]
    %v73 = vld [vmem:[%s1 + $0x168] sm:$0xff]
    %v74 = vld [vmem:[%s1 + $0x170] sm:$0xff]
    %v75 = vld [vmem:[%s1 + $0x178] sm:$0xff]
    %v76 = vld [vmem:[%s1 + $0x180] sm:$0xff]
    %v77 = vld [vmem:[%s1 + $0x188] sm:$0xff]
    %v78 = vld [vmem:[%s2] sm:$0x1]
    %v80 = vlaneseq
    %v81 = vshrl.u32 %v80, 7
    %v82 = vsub.s32 0, %v81
    %v83 = vrot.slane %v78, %v82
    %v86 = vcombine.high %v27, %v27
    %v88 = vunpack.c.l.s4 1983009808
    %v89 = vunpack.c.0.s8 %v88
    %v90 = vlaneseq
    %v91 = vshrl.u32 %v90, 7
    %v92 = vsub.s32 %v89, %v91
    %v93 = vrot.slane %v27, %v92
    %v95 = vunpack.c.l.s4 1983009808
    %v96 = vunpack.c.0.s8 %v95
    %v97 = vlaneseq
    %v98 = vshrl.u32 %v97, 7
    %v99 = vsub.s32 %v96, %v98
    %v100 = vrot.slane %v86, %v99
    %v101 = vcombine.high %v93, %v93
    %v102 = vcombine.high %v100, %v100
    %vm106 = vcmask 130048
    %v107 = vsel %vm106, %v102, 0
    %109 = vmatprep.subr.mxu0 0.0
    %110 = vmatpush1.msra.mxu0 %v43
    %111 = vmatprep.subr.mxu0 0.0
    %112 = vmatpush1.msra.mxu0 %v42
    %113 = vmatprep.subr.mxu0 0.0
    %114 = vmatpush1.msra.mxu0 %v41
    %115 = vmatprep.subr.mxu0 0.0
    %116 = vmatpush1.msra.mxu0 %v40
    %117 = vmatprep.subr.mxu0 0.0
    %118 = vmatpush1.msra.mxu0 %v39
    %119 = vmatprep.subr.mxu0 0.0
    %120 = vmatpush1.msra.mxu0 %v38
    %121 = vmatprep.subr.mxu0 0.0
    %122 = vmatpush1.msra.mxu0 %v37
    %123 = vmatprep.subr.mxu0 0.0
    %124 = vmatpush1.msra.mxu0 %v36
    %125 = vmatprep.subr.mxu0 0.0
    %126 = vmatpush1.msra.mxu0 %v35
    %127 = vmatprep.subr.mxu0 0.0
    %128 = vmatpush1.msra.mxu0 %v34
    %129 = vmatprep.subr.mxu0 0.0
    %130 = vmatpush1.msra.mxu0 %v33
    %131 = vmatprep.subr.mxu0 0.0
    %132 = vmatpush1.msra.mxu0 %v32
    %133 = vmatprep.subr.mxu0 0.0
    %134 = vmatpush1.msra.mxu0 %v31
    %135 = vmatprep.subr.mxu0 0.0
    %136 = vmatpush1.msra.mxu0 %v30
    %137 = vmatprep.subr.mxu0 0.0
    %138 = vmatpush1.msra.mxu0 %v29
    %139 = vmatprep.subr.mxu0 0.0
    %140 = vmatpush1.msra.mxu0 %v28
    %141 = vmatprep.subr.mxu0 0.0
    %142 = vmatpush2.msra.mxu0 %v59
    %143 = vmatprep.subr.mxu0 0.0
    %144 = vmatpush2.msra.mxu0 %v58
    %145 = vmatprep.subr.mxu0 0.0
    %146 = vmatpush2.msra.mxu0 %v57
    %147 = vmatprep.subr.mxu0 0.0
    %148 = vmatpush2.msra.mxu0 %v56
    %149 = vmatprep.subr.mxu0 0.0
    %150 = vmatpush2.msra.mxu0 %v55
    %151 = vmatprep.subr.mxu0 0.0
    %152 = vmatpush2.msra.mxu0 %v54
    %153 = vmatprep.subr.mxu0 0.0
    %154 = vmatpush2.msra.mxu0 %v53
    %155 = vmatprep.subr.mxu0 0.0
    %156 = vmatpush2.msra.mxu0 %v52
    %157 = vmatprep.subr.mxu0 0.0
    %158 = vmatpush2.msra.mxu0 %v51
    %159 = vmatprep.subr.mxu0 0.0
    %160 = vmatpush2.msra.mxu0 %v50
    %161 = vmatprep.subr.mxu0 0.0
    %162 = vmatpush2.msra.mxu0 %v49
    %163 = vmatprep.subr.mxu0 0.0
    %164 = vmatpush2.msra.mxu0 %v48
    %165 = vmatprep.subr.mxu0 0.0
    %166 = vmatpush2.msra.mxu0 %v47
    %167 = vmatprep.subr.mxu0 0.0
    %168 = vmatpush2.msra.mxu0 %v46
    %169 = vmatprep.subr.mxu0 0.0
    %170 = vmatpush2.msra.mxu0 %v45
    %171 = vmatprep.subr.mxu0 0.0
    %172 = vmatpush2.msra.mxu0 %v44
    %173 = vmatprep.mubr.f32.mxu0 %v101
    %174 = vmatmul.mubr.f32.gmra.mxu0 %v93
    %v175 = vpop.f32.mrf.mxu0
    %v176 = vadd.f32 %v83, %v175
    %v177 = vpop.f32.mrf.mxu0
    %178 = vdwg.mxu0
    %179 = vmatprep.subr.mxu0 0.0
    %180 = vmatpush1.msra.mxu0 %v75
    %181 = vmatprep.subr.mxu0 0.0
    %182 = vmatpush1.msra.mxu0 %v74
    %183 = vmatprep.subr.mxu0 0.0
    %184 = vmatpush1.msra.mxu0 %v73
    %185 = vmatprep.subr.mxu0 0.0
    %186 = vmatpush1.msra.mxu0 %v72
    %187 = vmatprep.subr.mxu0 0.0
    %188 = vmatpush1.msra.mxu0 %v71
    %189 = vmatprep.subr.mxu0 0.0
    %190 = vmatpush1.msra.mxu0 %v70
    %191 = vmatprep.subr.mxu0 0.0
    %192 = vmatpush1.msra.mxu0 %v69
    %193 = vmatprep.subr.mxu0 0.0
    %194 = vmatpush1.msra.mxu0 %v68
    %195 = vmatprep.subr.mxu0 0.0
    %196 = vmatpush1.msra.mxu0 %v67
    %197 = vmatprep.subr.mxu0 0.0
    %198 = vmatpush1.msra.mxu0 %v66
    %199 = vmatprep.subr.mxu0 0.0
    %200 = vmatpush1.msra.mxu0 %v65
    %201 = vmatprep.subr.mxu0 0.0
    %202 = vmatpush1.msra.mxu0 %v64
    %203 = vmatprep.subr.mxu0 0.0
    %204 = vmatpush1.msra.mxu0 %v63
    %205 = vmatprep.subr.mxu0 0.0
    %206 = vmatpush1.msra.mxu0 %v62
    %207 = vmatprep.subr.mxu0 0.0
    %208 = vmatpush1.msra.mxu0 %v61
    %209 = vmatprep.subr.mxu0 0.0
    %210 = vmatpush1.msra.mxu0 %v60
    %211 = vmatprep.subr.mxu0 0.0
    %212 = vmatpush2.msra.mxu0 0.0
    %213 = vmatprep.subr.mxu0 0.0
    %214 = vmatpush2.msra.mxu0 0.0
    %215 = vmatprep.subr.mxu0 0.0
    %216 = vmatpush2.msra.mxu0 0.0
    %217 = vmatprep.subr.mxu0 0.0
    %218 = vmatpush2.msra.mxu0 0.0
    %219 = vmatprep.subr.mxu0 0.0
    %220 = vmatpush2.msra.mxu0 0.0
    %221 = vmatprep.subr.mxu0 0.0
    %222 = vmatpush2.msra.mxu0 0.0
    %223 = vmatprep.subr.mxu0 0.0
    %224 = vmatpush2.msra.mxu0 0.0
    %225 = vmatprep.subr.mxu0 0.0
    %226 = vmatpush2.msra.mxu0 0.0
    %227 = vmatprep.subr.mxu0 0.0
    %228 = vmatpush2.msra.mxu0 0.0
    %229 = vmatprep.subr.mxu0 0.0
    %230 = vmatpush2.msra.mxu0 0.0
    %231 = vmatprep.subr.mxu0 0.0
    %232 = vmatpush2.msra.mxu0 0.0
    %233 = vmatprep.subr.mxu0 0.0
    %234 = vmatpush2.msra.mxu0 0.0
    %235 = vmatprep.subr.mxu0 0.0
    %236 = vmatpush2.msra.mxu0 0.0
    %237 = vmatprep.subr.mxu0 0.0
    %238 = vmatpush2.msra.mxu0 0.0
    %239 = vmatprep.subr.mxu0 0.0
    %240 = vmatpush2.msra.mxu0 %v77
    %241 = vmatprep.subr.mxu0 0.0
    %242 = vmatpush2.msra.mxu0 %v76
    %243 = vmatprep.mubr.f32.mxu0 %v107
    %244 = vmatmul.mubr.f32.gmra.mxu0 %v100
    %v245 = vpop.f32.mrf.mxu0
    %v246 = vadd.f32 %v176, %v245
    %v247 = vpop.f32.mrf.mxu0
    %248 = vdwg.mxu0
    %v249 = vmax.f32 %v246, 0.0
    %v250 = vld [vmem:[%s3] sm:$0xff]
    %v251 = vld [vmem:[%s3 + $0x8] sm:$0xff]
    %v252 = vld [vmem:[%s3 + $0x10] sm:$0xff]
    %v253 = vld [vmem:[%s3 + $0x18] sm:$0xff]
    %v254 = vld [vmem:[%s3 + $0x20] sm:$0xff]
    %v255 = vld [vmem:[%s3 + $0x28] sm:$0xff]
    %v256 = vld [vmem:[%s3 + $0x30] sm:$0xff]
    %v257 = vld [vmem:[%s3 + $0x38] sm:$0xff]
    %v258 = vld [vmem:[%s3 + $0x40] sm:$0xff]
    %v259 = vld [vmem:[%s3 + $0x48] sm:$0xff]
    %v260 = vld [vmem:[%s3 + $0x50] sm:$0xff]
    %v261 = vld [vmem:[%s3 + $0x58] sm:$0xff]
    %v262 = vld [vmem:[%s3 + $0x60] sm:$0xff]
    %v263 = vld [vmem:[%s3 + $0x68] sm:$0xff]
    %v264 = vld [vmem:[%s3 + $0x70] sm:$0xff]
    %v265 = vld [vmem:[%s3 + $0x78] sm:$0xff]
    %v266 = vld [vmem:[%s4] sm:$0x1]
    %v268 = vlaneseq
    %v269 = vshrl.u32 %v268, 7
    %v270 = vsub.s32 0, %v269
    %v271 = vrot.slane %v266, %v270
    %273 = vmatprep.subr.mxu0 0.0
    %274 = vmatpush1.msra.mxu0 %v265
    %275 = vmatprep.subr.mxu0 0.0
    %276 = vmatpush1.msra.mxu0 %v264
    %277 = vmatprep.subr.mxu0 0.0
    %278 = vmatpush1.msra.mxu0 %v263
    %279 = vmatprep.subr.mxu0 0.0
    %280 = vmatpush1.msra.mxu0 %v262
    %281 = vmatprep.subr.mxu0 0.0
    %282 = vmatpush1.msra.mxu0 %v261
    %283 = vmatprep.subr.mxu0 0.0
    %284 = vmatpush1.msra.mxu0 %v260
    %285 = vmatprep.subr.mxu0 0.0
    %286 = vmatpush1.msra.mxu0 %v259
    %287 = vmatprep.subr.mxu0 0.0
    %288 = vmatpush1.msra.mxu0 %v258
    %289 = vmatprep.subr.mxu0 0.0
    %290 = vmatpush1.msra.mxu0 %v257
    %291 = vmatprep.subr.mxu0 0.0
    %292 = vmatpush1.msra.mxu0 %v256
    %293 = vmatprep.subr.mxu0 0.0
    %294 = vmatpush1.msra.mxu0 %v255
    %295 = vmatprep.subr.mxu0 0.0
    %296 = vmatpush1.msra.mxu0 %v254
    %297 = vmatprep.subr.mxu0 0.0
    %298 = vmatpush1.msra.mxu0 %v253
    %299 = vmatprep.subr.mxu0 0.0
    %300 = vmatpush1.msra.mxu0 %v252
    %301 = vmatprep.subr.mxu0 0.0
    %302 = vmatpush1.msra.mxu0 %v251
    %303 = vmatprep.subr.mxu0 0.0
    %304 = vmatpush1.msra.mxu0 %v250
    %305 = vmatprep.subr.mxu0 0.0
    %306 = vmatpush2.msra.mxu0 0.0
    %307 = vmatprep.subr.mxu0 0.0
    %308 = vmatpush2.msra.mxu0 0.0
    %309 = vmatprep.subr.mxu0 0.0
    %310 = vmatpush2.msra.mxu0 0.0
    %311 = vmatprep.subr.mxu0 0.0
    %312 = vmatpush2.msra.mxu0 0.0
    %313 = vmatprep.subr.mxu0 0.0
    %314 = vmatpush2.msra.mxu0 0.0
    %315 = vmatprep.subr.mxu0 0.0
    %316 = vmatpush2.msra.mxu0 0.0
    %317 = vmatprep.subr.mxu0 0.0
    %318 = vmatpush2.msra.mxu0 0.0
    %319 = vmatprep.subr.mxu0 0.0
    %320 = vmatpush2.msra.mxu0 0.0
    %321 = vmatprep.subr.mxu0 0.0
    %322 = vmatpush2.msra.mxu0 0.0
    %323 = vmatprep.subr.mxu0 0.0
    %324 = vmatpush2.msra.mxu0 0.0
    %325 = vmatprep.subr.mxu0 0.0
    %326 = vmatpush2.msra.mxu0 0.0
    %327 = vmatprep.subr.mxu0 0.0
    %328 = vmatpush2.msra.mxu0 0.0
    %329 = vmatprep.subr.mxu0 0.0
    %330 = vmatpush2.msra.mxu0 0.0
    %331 = vmatprep.subr.mxu0 0.0
    %332 = vmatpush2.msra.mxu0 0.0
    %333 = vmatprep.subr.mxu0 0.0
    %334 = vmatpush2.msra.mxu0 0.0
    %335 = vmatprep.subr.mxu0 0.0
    %336 = vmatpush2.msra.mxu0 0.0
    %337 = vmatprep.mubr.f32.mxu0 0.0
    %338 = vmatmul.mubr.f32.gmra.mxu0 %v249
    %v339 = vpop.f32.mrf.mxu0
    %v340 = vadd.f32 %v271, %v339
    %v341 = vpop.f32.mrf.mxu0
    %342 = vdwg.mxu0
    %v343 = vmax.f32 %v340, 0.0
    %v344 = vld [vmem:[%s5] sm:$0xff]
    %v345 = vld [vmem:[%s5 + $0x8] sm:$0xff]
    %v346 = vld [vmem:[%s5 + $0x10] sm:$0xff]
    %v347 = vld [vmem:[%s5 + $0x18] sm:$0xff]
    %v348 = vld [vmem:[%s5 + $0x20] sm:$0xff]
    %v349 = vld [vmem:[%s5 + $0x28] sm:$0xff]
    %v350 = vld [vmem:[%s5 + $0x30] sm:$0xff]
    %v351 = vld [vmem:[%s5 + $0x38] sm:$0xff]
    %v352 = vld [vmem:[%s5 + $0x40] sm:$0xff]
    %v353 = vld [vmem:[%s5 + $0x48] sm:$0xff]
    %v354 = vld [vmem:[%s5 + $0x50] sm:$0xff]
    %v355 = vld [vmem:[%s5 + $0x58] sm:$0xff]
    %v356 = vld [vmem:[%s5 + $0x60] sm:$0xff]
    %v357 = vld [vmem:[%s5 + $0x68] sm:$0xff]
    %v358 = vld [vmem:[%s5 + $0x70] sm:$0xff]
    %v359 = vld [vmem:[%s5 + $0x78] sm:$0xff]
    %v360 = vld [vmem:[%s6] sm:$0x1]
    %v362 = vlaneseq
    %v363 = vshrl.u32 %v362, 7
    %v364 = vsub.s32 0, %v363
    %v365 = vrot.slane %v360, %v364
    %367 = vmatprep.subr.mxu0 0.0
    %368 = vmatpush1.msra.mxu0 %v359
    %369 = vmatprep.subr.mxu0 0.0
    %370 = vmatpush1.msra.mxu0 %v358
    %371 = vmatprep.subr.mxu0 0.0
    %372 = vmatpush1.msra.mxu0 %v357
    %373 = vmatprep.subr.mxu0 0.0
    %374 = vmatpush1.msra.mxu0 %v356
    %375 = vmatprep.subr.mxu0 0.0
    %376 = vmatpush1.msra.mxu0 %v355
    %377 = vmatprep.subr.mxu0 0.0
    %378 = vmatpush1.msra.mxu0 %v354
    %379 = vmatprep.subr.mxu0 0.0
    %380 = vmatpush1.msra.mxu0 %v353
    %381 = vmatprep.subr.mxu0 0.0
    %382 = vmatpush1.msra.mxu0 %v352
    %383 = vmatprep.subr.mxu0 0.0
    %384 = vmatpush1.msra.mxu0 %v351
    %385 = vmatprep.subr.mxu0 0.0
    %386 = vmatpush1.msra.mxu0 %v350
    %387 = vmatprep.subr.mxu0 0.0
    %388 = vmatpush1.msra.mxu0 %v349
    %389 = vmatprep.subr.mxu0 0.0
    %390 = vmatpush1.msra.mxu0 %v348
    %391 = vmatprep.subr.mxu0 0.0
    %392 = vmatpush1.msra.mxu0 %v347
    %393 = vmatprep.subr.mxu0 0.0
    %394 = vmatpush1.msra.mxu0 %v346
    %395 = vmatprep.subr.mxu0 0.0
    %396 = vmatpush1.msra.mxu0 %v345
    %397 = vmatprep.subr.mxu0 0.0
    %398 = vmatpush1.msra.mxu0 %v344
    %399 = vmatprep.subr.mxu0 0.0
    %400 = vmatpush2.msra.mxu0 0.0
    %401 = vmatprep.subr.mxu0 0.0
    %402 = vmatpush2.msra.mxu0 0.0
    %403 = vmatprep.subr.mxu0 0.0
    %404 = vmatpush2.msra.mxu0 0.0
    %405 = vmatprep.subr.mxu0 0.0
    %406 = vmatpush2.msra.mxu0 0.0
    %407 = vmatprep.subr.mxu0 0.0
    %408 = vmatpush2.msra.mxu0 0.0
    %409 = vmatprep.subr.mxu0 0.0
    %410 = vmatpush2.msra.mxu0 0.0
    %411 = vmatprep.subr.mxu0 0.0
    %412 = vmatpush2.msra.mxu0 0.0
    %413 = vmatprep.subr.mxu0 0.0
    %414 = vmatpush2.msra.mxu0 0.0
    %415 = vmatprep.subr.mxu0 0.0
    %416 = vmatpush2.msra.mxu0 0.0
    %417 = vmatprep.subr.mxu0 0.0
    %418 = vmatpush2.msra.mxu0 0.0
    %419 = vmatprep.subr.mxu0 0.0
    %420 = vmatpush2.msra.mxu0 0.0
    %421 = vmatprep.subr.mxu0 0.0
    %422 = vmatpush2.msra.mxu0 0.0
    %423 = vmatprep.subr.mxu0 0.0
    %424 = vmatpush2.msra.mxu0 0.0
    %425 = vmatprep.subr.mxu0 0.0
    %426 = vmatpush2.msra.mxu0 0.0
    %427 = vmatprep.subr.mxu0 0.0
    %428 = vmatpush2.msra.mxu0 0.0
    %429 = vmatprep.subr.mxu0 0.0
    %430 = vmatpush2.msra.mxu0 0.0
    %431 = vmatprep.mubr.f32.mxu0 0.0
    %432 = vmatmul.mubr.f32.gmra.mxu0 %v343
    %v433 = vpop.f32.mrf.mxu0
    %v434 = vadd.f32 %v365, %v433
    %v435 = vpop.f32.mrf.mxu0
    %436 = vdwg.mxu0
    %437 = vst [vmem:[#allocation2] sm:$0x3] %v434
    // Predicated region
    $region30: #{lenet_forward.5} parent=1 // pred_check
      _
    $region31: #{lenet_forward.5} parent=1 // pred_check_branch
      %439 = sbr.rel (0) target = $region33
    $region32: #{lenet_forward.5} parent=1 // pred_region
      %s441 = ssub.s32 32, 32
      %442 = vsyncadd [#allocation3], %s441
      %s444 = sshll.u32 [#allocation2], 4
      %s445 = int_to_ptr.vmem [resolvable:$true] %s444
      %447 = dma.vmem_to_hbm [thread:$0]  %s445, 32, %s7, [#allocation3]
    $region33: #{lenet_forward.5} parent=1 // pred_fallthru
      _
    // Predicated region
    $region34: #{lenet_forward.5} parent=1 // pred_check
      _
    $region35: #{lenet_forward.5} parent=1 // pred_check_branch
      %449 = sbr.rel (0) target = $region37
    $region36: #{lenet_forward.5} parent=1 // pred_region
      %450 = dma.done [#allocation3], 32
    $region37: #{lenet_forward.5} parent=1 // pred_fallthru
      _
    %451 = vsyncpa [#allocation3], 1

</llo_original>
